<compile_context>
chip_gen: v5e
topology: v5e:2x2
jax: 0.10.0
libtpu: 0.0.40
codegen_flags: <defaults>
</compile_context>

<pallas_src>
import jax
import jax.numpy as jnp
from jax.experimental import pallas as pl
from jax.experimental.pallas import tpu as pltpu

# ----------------------------- config (small) -----------------------------
BATCH = 2
SEQ = 8
HIDDEN = 32
NUM_HEADS = 2
HEAD_DIM = HIDDEN // NUM_HEADS
INTERMEDIATE = 64
NUM_LAYERS = 2
VOCAB = 50
NUM_LABELS = 5
OUT_PAD = 128            # lane-dense output width for pooled + logits
LN_EPS = 1e-5


# --------------------------- in-kernel helpers ---------------------------
def _layernorm(x, g, b):
    x = x.astype(jnp.float32)
    mu = jnp.mean(x, axis=-1, keepdims=True)
    var = jnp.mean(jnp.square(x - mu), axis=-1, keepdims=True)
    return (x - mu) * jax.lax.rsqrt(var + LN_EPS) * g + b


# ------------------------- fused encoder kernel --------------------------
def _encoder_kernel(emb_ref, bias_ref, emb_g_ref, emb_b_ref,
                    wqkv_ref, bqkv_ref, wo_ref, bo_ref,
                    ln1_g_ref, ln1_b_ref,
                    wi_ref, bi_ref, wf_ref, bf_ref,
                    ln2_g_ref, ln2_b_ref,
                    pool_w_ref, pool_b_ref, out_w_ref, out_b_ref,
                    pooled_ref, logits_ref):
    # One example per grid step ("parallel" -> batch shards across TensorCores
    # on multi-core chips).  Layers are statically unrolled: at toy sizes the
    # per-grid-step overhead of a layer grid dominates the 32x32 matmuls.
    bias = bias_ref[...]                                  # (1, 1, S) f32, built once on host
    scale = jnp.float32(1.0 / (HEAD_DIM ** 0.5))

    # Embedding LayerNorm -> bf16 activations (MXU inputs bf16, LN/softmax f32).
    h = _layernorm(emb_ref[...], emb_g_ref[...], emb_b_ref[...]).astype(jnp.bfloat16)

    for li in range(NUM_LAYERS):                          # static unroll (tiny L)
        # ---- fused per-head QKV: one batched einsum over (q|k|v, head) ----
        h_g = jnp.broadcast_to(h[None], (3 * NUM_HEADS, SEQ, HIDDEN))
        qkv = jnp.einsum("gsh,ghd->gsd", h_g, wqkv_ref[li],
                         preferred_element_type=jnp.float32) + bqkv_ref[li]
        q = qkv[0:NUM_HEADS]                              # (N, S, D) leading-dim slices only
        k = qkv[NUM_HEADS:2 * NUM_HEADS]
        v = qkv[2 * NUM_HEADS:3 * NUM_HEADS]

        # ---- batched-head attention (no per-head loop, no lane concat) ----
        s = jnp.einsum("nqd,nkd->nqk",
                       q.astype(jnp.bfloat16), k.astype(jnp.bfloat16),
                       preferred_element_type=jnp.float32) * scale + bias
        m = jnp.max(s, axis=-1, keepdims=True)
        p = jnp.exp(s - m)
        p = p * pl.reciprocal(jnp.sum(p, axis=-1, keepdims=True), approx=True)
        ctx = jnp.einsum("nqk,nkd->nqd",
                         p.astype(jnp.bfloat16), v.astype(jnp.bfloat16),
                         preferred_element_type=jnp.float32)   # (N, S, D)

        # ---- output projection against per-head wo (N, D, H); heads summed ----
        attn = jnp.einsum("nsd,ndh->nsh",
                          ctx.astype(jnp.bfloat16), wo_ref[li],
                          preferred_element_type=jnp.float32).sum(axis=0) + bo_ref[li]
        h1 = _layernorm(attn + h.astype(jnp.float32),
                        ln1_g_ref[li], ln1_b_ref[li]).astype(jnp.bfloat16)

        # ---- FFN (intermediate never leaves VMEM) + residual + LN ----
        # TODO(synk): HF RoBERTa uses exact erf GELU; tanh approximation used here.
        inter = jax.nn.gelu(
            jnp.dot(h1, wi_ref[li], preferred_element_type=jnp.float32) + bi_ref[li],
            approximate=True)
        ffn = jnp.dot(inter.astype(jnp.bfloat16), wf_ref[li],
                      preferred_element_type=jnp.float32) + bf_ref[li]
        h = _layernorm(ffn + h1.astype(jnp.float32),
                       ln2_g_ref[li], ln2_b_ref[li]).astype(jnp.bfloat16)

    # ---- pooler (tanh on [CLS]) + classifier, both lane-dense 128-wide ----
    cls = h[0:1, :]                                       # (1, H) first token
    pooled_pad = jnp.tanh(
        jnp.dot(cls, pool_w_ref[...], preferred_element_type=jnp.float32)
        + pool_b_ref[...])                                # (1, 128); cols >= H are tanh(0)=0
    pooled_ref[...] = pooled_pad                          # full-lane vst
    # TODO(synk): nn.Dropout is identity at inference; no training dropout path.
    logits_ref[...] = (jnp.dot(pooled_pad.astype(jnp.bfloat16), out_w_ref[...],
                               preferred_element_type=jnp.float32) + out_b_ref[...])


# ----------------------------- forward pass -----------------------------
def roberta_multilabel_forward(params, input_ids, attention_mask):
    B, S = input_ids.shape

    # Embedding gather is plain-JAX glue; everything after is one kernel.
    positions = jnp.arange(S)
    emb = (params["word_emb"][input_ids]
           + params["pos_emb"][positions][None, :, :]
           + params["type_emb"]).astype(jnp.float32)      # (B, S, H)

    # Additive key-padding bias, built once on host (hoisted out of the kernel).
    mask_bias = ((1.0 - attention_mask.astype(jnp.float32))
                 * jnp.float32(-1e9))[:, None, None, :]   # (B, 1, 1, S)

    L, N, D = NUM_LAYERS, NUM_HEADS, HEAD_DIM

    def _batch_spec(*tail):
        zeros = (0,) * len(tail)

        def idx(b):
            return (b,) + zeros
        return pl.BlockSpec((pl.Squeezed(),) + tail, idx)

    def _const_spec(shape):
        zeros = (0,) * len(shape)

        def idx(b):
            return zeros
        return pl.BlockSpec(shape, idx)

    grid_spec = pltpu.PrefetchScalarGridSpec(
        num_scalar_prefetch=0,
        grid=(BATCH,),
        in_specs=[
            _batch_spec(SEQ, HIDDEN),                                    # embeddings
            _batch_spec(1, 1, SEQ),                                      # mask bias
            _const_spec((1, HIDDEN)), _const_spec((1, HIDDEN)),          # emb LN g,b
            _const_spec((L, 3 * N, HIDDEN, D)),                          # wqkv (per q/k/v, head)
            _const_spec((L, 3 * N, 1, D)),                               # bqkv
            _const_spec((L, N, D, HIDDEN)), _const_spec((L, 1, HIDDEN)),  # wo, bo
            _const_spec((L, 1, HIDDEN)), _const_spec((L, 1, HIDDEN)),    # ln1 g,b
            _const_spec((L, HIDDEN, INTERMEDIATE)),                      # wi
            _const_spec((L, 1, INTERMEDIATE)),                           # bi
            _const_spec((L, INTERMEDIATE, HIDDEN)),                      # wf
            _const_spec((L, 1, HIDDEN)),                                 # bf
            _const_spec((L, 1, HIDDEN)), _const_spec((L, 1, HIDDEN)),    # ln2 g,b
            _const_spec((HIDDEN, OUT_PAD)), _const_spec((1, OUT_PAD)),   # pooler (padded)
            _const_spec((OUT_PAD, OUT_PAD)), _const_spec((1, OUT_PAD)),  # classifier (padded)
        ],
        out_specs=(
            _batch_spec(1, OUT_PAD),                                     # pooled  (padded)
            _batch_spec(1, OUT_PAD),                                     # logits  (padded)
        ),
    )

    pooled_pad, logits_pad = pl.pallas_call(
        _encoder_kernel,
        out_shape=(jax.ShapeDtypeStruct((BATCH, 1, OUT_PAD), jnp.float32),
                   jax.ShapeDtypeStruct((BATCH, 1, OUT_PAD), jnp.float32)),
        grid_spec=grid_spec,
        compiler_params=pltpu.CompilerParams(
            dimension_semantics=("parallel",)),            # batch axis -> 2nd TC on v7x
    )(emb, mask_bias,
      params["emb_ln_g"], params["emb_ln_b"],
      params["wqkv"], params["bqkv"], params["wo"], params["bo"],
      params["ln1_g"], params["ln1_b"],
      params["wi"], params["bi"], params["wf"], params["bf"],
      params["ln2_g"], params["ln2_b"],
      params["pool_w"], params["pool_b"], params["out_w"], params["out_b"])

    pooled = pooled_pad[:, 0, :HIDDEN]                     # drop lane padding on host
    logits = logits_pad[:, 0, :NUM_LABELS]
    return logits, pooled


# ----------------------------- parameter init -----------------------------
def init_params(key):
    ks = iter(jax.random.split(key, 16))

    def w(shape, dtype=jnp.bfloat16):
        return (jax.random.normal(next(ks), shape, jnp.float32) * 0.02).astype(dtype)

    L, H, I, N, D = NUM_LAYERS, HIDDEN, INTERMEDIATE, NUM_HEADS, HEAD_DIM

    # Pooler / classifier weights zero-padded so padded lanes contribute 0.
    pool_w = jnp.zeros((H, OUT_PAD), jnp.float32).at[:, :H].set(
        jax.random.normal(next(ks), (H, H), jnp.float32) * 0.02)
    out_w = jnp.zeros((OUT_PAD, OUT_PAD), jnp.float32).at[:H, :NUM_LABELS].set(
        jax.random.normal(next(ks), (H, NUM_LABELS), jnp.float32) * 0.02)

    return {
        "word_emb": w((VOCAB, H), jnp.float32),
        "pos_emb": w((SEQ, H), jnp.float32),
        "type_emb": w((1, 1, H), jnp.float32),
        "emb_ln_g": jnp.ones((1, H), jnp.float32),
        "emb_ln_b": jnp.zeros((1, H), jnp.float32),
        # Q/K/V stored per (q|k|v, head) so the kernel never slices activations
        # at sub-128-lane offsets; bf16 MXU inputs, f32 biases/LN params.
        "wqkv": w((L, 3 * N, H, D)),
        "bqkv": jnp.zeros((L, 3 * N, 1, D), jnp.float32),
        "wo": w((L, N, D, H)),                    # per-head output projection
        "bo": jnp.zeros((L, 1, H), jnp.float32),
        "ln1_g": jnp.ones((L, 1, H), jnp.float32),
        "ln1_b": jnp.zeros((L, 1, H), jnp.float32),
        "wi": w((L, H, I)), "bi": jnp.zeros((L, 1, I), jnp.float32),
        "wf": w((L, I, H)), "bf": jnp.zeros((L, 1, H), jnp.float32),
        "ln2_g": jnp.ones((L, 1, H), jnp.float32),
        "ln2_b": jnp.zeros((L, 1, H), jnp.float32),
        "pool_w": pool_w.astype(jnp.bfloat16),
        "pool_b": jnp.zeros((1, OUT_PAD), jnp.float32),
        "out_w": out_w.astype(jnp.bfloat16),
        "out_b": jnp.zeros((1, OUT_PAD), jnp.float32),
    }


# ----------------------------- main -----------------------------
if __name__ == "__main__":
    key = jax.random.PRNGKey(0)
    k_param, k_ids = jax.random.split(key)
    params = init_params(k_param)

    input_ids = jax.random.randint(k_ids, (BATCH, SEQ), 0, VOCAB, dtype=jnp.int32)
    attention_mask = jnp.array(
        [[1] * SEQ,
         [1] * (SEQ - 2) + [0, 0]], dtype=jnp.int32)   # second example padded

    fwd = jax.jit(roberta_multilabel_forward)
    logits, pooled = fwd(params, input_ids, attention_mask)
    jax.block_until_ready((logits, pooled))

    assert logits.shape == (BATCH, NUM_LABELS)
    assert pooled.shape == (BATCH, HIDDEN)
    assert bool(jnp.all(jnp.isfinite(logits))) and bool(jnp.all(jnp.isfinite(pooled)))
    print("KERNEL_OK")
</pallas_src>

<mosaic_0001>
module attributes {stable_mosaic.version = 11 : i64} {
  func.func @_encoder_kernel(%arg0: i32, %arg1: memref<1x8x32xf32, #tpu.memory_space<vmem>>, %arg2: memref<1x1x1x8xf32, #tpu.memory_space<vmem>>, %arg3: memref<1x32xf32, #tpu.memory_space<vmem>>, %arg4: memref<1x32xf32, #tpu.memory_space<vmem>>, %arg5: memref<2x6x32x16xbf16, #tpu.memory_space<vmem>>, %arg6: memref<2x6x1x16xf32, #tpu.memory_space<vmem>>, %arg7: memref<2x2x16x32xbf16, #tpu.memory_space<vmem>>, %arg8: memref<2x1x32xf32, #tpu.memory_space<vmem>>, %arg9: memref<2x1x32xf32, #tpu.memory_space<vmem>>, %arg10: memref<2x1x32xf32, #tpu.memory_space<vmem>>, %arg11: memref<2x32x64xbf16, #tpu.memory_space<vmem>>, %arg12: memref<2x1x64xf32, #tpu.memory_space<vmem>>, %arg13: memref<2x64x32xbf16, #tpu.memory_space<vmem>>, %arg14: memref<2x1x32xf32, #tpu.memory_space<vmem>>, %arg15: memref<2x1x32xf32, #tpu.memory_space<vmem>>, %arg16: memref<2x1x32xf32, #tpu.memory_space<vmem>>, %arg17: memref<32x128xbf16, #tpu.memory_space<vmem>>, %arg18: memref<1x128xf32, #tpu.memory_space<vmem>>, %arg19: memref<128x128xbf16, #tpu.memory_space<vmem>>, %arg20: memref<1x128xf32, #tpu.memory_space<vmem>>, %arg21: memref<1x1x128xf32, #tpu.memory_space<vmem>>, %arg22: memref<1x1x128xf32, #tpu.memory_space<vmem>>) attributes {dimension_semantics = [#tpu.dimension_semantics<parallel>], iteration_bounds = array<i64: 2>, scalar_prefetch = 0 : i64, scratch_operands = 0 : i64, tpu.core_type = #tpu.core_type<tc>, window_params = [{transform_indices = @transform_0, window_bounds = array<i64: 1, 8, 32>}, {transform_indices = @transform_1, window_bounds = array<i64: 1, 1, 1, 8>}, {pipeline_mode = #tpu.pipeline_mode<synchronous>, transform_indices = @transform_2, window_bounds = array<i64: 1, 32>}, {pipeline_mode = #tpu.pipeline_mode<synchronous>, transform_indices = @transform_3, window_bounds = array<i64: 1, 32>}, {pipeline_mode = #tpu.pipeline_mode<synchronous>, transform_indices = @transform_4, window_bounds = array<i64: 2, 6, 32, 16>}, {pipeline_mode = #tpu.pipeline_mode<synchronous>, transform_indices = @transform_5, window_bounds = array<i64: 2, 6, 1, 16>}, {pipeline_mode = #tpu.pipeline_mode<synchronous>, transform_indices = @transform_6, window_bounds = array<i64: 2, 2, 16, 32>}, {pipeline_mode = #tpu.pipeline_mode<synchronous>, transform_indices = @transform_7, window_bounds = array<i64: 2, 1, 32>}, {pipeline_mode = #tpu.pipeline_mode<synchronous>, transform_indices = @transform_8, window_bounds = array<i64: 2, 1, 32>}, {pipeline_mode = #tpu.pipeline_mode<synchronous>, transform_indices = @transform_9, window_bounds = array<i64: 2, 1, 32>}, {pipeline_mode = #tpu.pipeline_mode<synchronous>, transform_indices = @transform_10, window_bounds = array<i64: 2, 32, 64>}, {pipeline_mode = #tpu.pipeline_mode<synchronous>, transform_indices = @transform_11, window_bounds = array<i64: 2, 1, 64>}, {pipeline_mode = #tpu.pipeline_mode<synchronous>, transform_indices = @transform_12, window_bounds = array<i64: 2, 64, 32>}, {pipeline_mode = #tpu.pipeline_mode<synchronous>, transform_indices = @transform_13, window_bounds = array<i64: 2, 1, 32>}, {pipeline_mode = #tpu.pipeline_mode<synchronous>, transform_indices = @transform_14, window_bounds = array<i64: 2, 1, 32>}, {pipeline_mode = #tpu.pipeline_mode<synchronous>, transform_indices = @transform_15, window_bounds = array<i64: 2, 1, 32>}, {pipeline_mode = #tpu.pipeline_mode<synchronous>, transform_indices = @transform_16, window_bounds = array<i64: 32, 128>}, {pipeline_mode = #tpu.pipeline_mode<synchronous>, transform_indices = @transform_17, window_bounds = array<i64: 1, 128>}, {pipeline_mode = #tpu.pipeline_mode<synchronous>, transform_indices = @transform_18, window_bounds = array<i64: 128, 128>}, {pipeline_mode = #tpu.pipeline_mode<synchronous>, transform_indices = @transform_19, window_bounds = array<i64: 1, 128>}, {transform_indices = @transform_20, window_bounds = array<i64: 1, 1, 128>}, {transform_indices = @transform_21, window_bounds = array<i64: 1, 1, 128>}]} {
    %c0 = arith.constant 0 : index
    %c0_0 = arith.constant 0 : index
    %c0_1 = arith.constant 0 : index
    %c0_2 = arith.constant 0 : index
    %0 = vector.load %arg2[%c0, %c0_0, %c0_1, %c0_2] : memref<1x1x1x8xf32, #tpu.memory_space<vmem>>, vector<1x1x1x8xf32>
    %1 = vector.shape_cast %0 : vector<1x1x1x8xf32> to vector<1x1x8xf32>
    %c0_3 = arith.constant 0 : index
    %c0_4 = arith.constant 0 : index
    %c0_5 = arith.constant 0 : index
    %2 = vector.load %arg1[%c0_3, %c0_4, %c0_5] : memref<1x8x32xf32, #tpu.memory_space<vmem>>, vector<1x8x32xf32>
    %3 = vector.shape_cast %2 : vector<1x8x32xf32> to vector<8x32xf32>
    %c0_6 = arith.constant 0 : index
    %c0_7 = arith.constant 0 : index
    %4 = vector.load %arg3[%c0_6, %c0_7] : memref<1x32xf32, #tpu.memory_space<vmem>>, vector<1x32xf32>
    %c0_8 = arith.constant 0 : index
    %c0_9 = arith.constant 0 : index
    %5 = vector.load %arg4[%c0_8, %c0_9] : memref<1x32xf32, #tpu.memory_space<vmem>>, vector<1x32xf32>
    %cst = arith.constant dense<0.000000e+00> : vector<8xf32>
    %6 = vector.multi_reduction <add>, %3, %cst [1] : vector<8x32xf32> to vector<8xf32>
    %7 = vector.shape_cast %6 : vector<8xf32> to vector<8x1xf32>
    %cst_10 = arith.constant 3.200000e+01 : f32
    %8 = vector.broadcast %cst_10 : f32 to vector<8x1xf32>
    %9 = arith.divf %7, %8 : vector<8x1xf32>
    %10 = vector.broadcast %9 : vector<8x1xf32> to vector<8x32xf32>
    %11 = arith.subf %3, %10 : vector<8x32xf32>
    %12 = arith.mulf %11, %11 : vector<8x32xf32>
    %cst_11 = arith.constant dense<0.000000e+00> : vector<8xf32>
    %13 = vector.multi_reduction <add>, %12, %cst_11 [1] : vector<8x32xf32> to vector<8xf32>
    %14 = vector.shape_cast %13 : vector<8xf32> to vector<8x1xf32>
    %cst_12 = arith.constant 3.200000e+01 : f32
    %15 = vector.broadcast %cst_12 : f32 to vector<8x1xf32>
    %16 = arith.divf %14, %15 : vector<8x1xf32>
    %17 = vector.broadcast %9 : vector<8x1xf32> to vector<8x32xf32>
    %18 = arith.subf %3, %17 : vector<8x32xf32>
    %cst_13 = arith.constant 9.99999974E-6 : f32
    %19 = vector.broadcast %cst_13 : f32 to vector<8x1xf32>
    %20 = arith.addf %16, %19 : vector<8x1xf32>
    %21 = math.rsqrt %20 : vector<8x1xf32>
    %22 = vector.broadcast %21 : vector<8x1xf32> to vector<8x32xf32>
    %23 = arith.mulf %18, %22 : vector<8x32xf32>
    %24 = vector.broadcast %4 : vector<1x32xf32> to vector<8x32xf32>
    %25 = arith.mulf %23, %24 : vector<8x32xf32>
    %26 = vector.broadcast %5 : vector<1x32xf32> to vector<8x32xf32>
    %27 = arith.addf %25, %26 : vector<8x32xf32>
    %28 = arith.truncf %27 : vector<8x32xf32> to vector<8x32xbf16>
    %29 = vector.shape_cast %28 : vector<8x32xbf16> to vector<1x8x32xbf16>
    %30 = vector.shape_cast %29 : vector<1x8x32xbf16> to vector<1x8x32xbf16>
    %31 = vector.broadcast %30 : vector<1x8x32xbf16> to vector<6x8x32xbf16>
    %c0_14 = arith.constant 0 : index
    %c0_15 = arith.constant 0 : index
    %c0_16 = arith.constant 0 : index
    %c0_17 = arith.constant 0 : index
    %32 = vector.load %arg5[%c0_14, %c0_15, %c0_16, %c0_17] : memref<2x6x32x16xbf16, #tpu.memory_space<vmem>>, vector<1x6x32x16xbf16>
    %33 = vector.shape_cast %32 : vector<1x6x32x16xbf16> to vector<6x32x16xbf16>
    "tpu.trace_start"() <{level = 10 : i32, message = "gsh,ghd->gsd"}> : () -> ()
    %cst_18 = arith.constant dense<0.000000e+00> : vector<6x8x16xf32>
    %34 = tpu.matmul %31, %33, %cst_18 {dimension_numbers = #tpu.dot_dimension_numbers<[2], [1], [1], [2], [0, 0, 0, 1, 1, 2], [0], [0]>} : vector<6x8x32xbf16>, vector<6x32x16xbf16>, vector<6x8x16xf32> -> vector<6x8x16xf32>
    "tpu.trace_stop"() : () -> ()
    %c0_19 = arith.constant 0 : index
    %c0_20 = arith.constant 0 : index
    %c0_21 = arith.constant 0 : index
    %c0_22 = arith.constant 0 : index
    %35 = vector.load %arg6[%c0_19, %c0_20, %c0_21, %c0_22] : memref<2x6x1x16xf32, #tpu.memory_space<vmem>>, vector<1x6x1x16xf32>
    %36 = vector.shape_cast %35 : vector<1x6x1x16xf32> to vector<6x1x16xf32>
    %37 = vector.broadcast %36 : vector<6x1x16xf32> to vector<6x8x16xf32>
    %38 = arith.addf %34, %37 : vector<6x8x16xf32>
    %39 = vector.extract_strided_slice %38 {offsets = [0, 0, 0], sizes = [2, 8, 16], strides = [1, 1, 1]} : vector<6x8x16xf32> to vector<2x8x16xf32>
    %40 = vector.extract_strided_slice %38 {offsets = [2, 0, 0], sizes = [2, 8, 16], strides = [1, 1, 1]} : vector<6x8x16xf32> to vector<2x8x16xf32>
    %41 = vector.extract_strided_slice %38 {offsets = [4, 0, 0], sizes = [2, 8, 16], strides = [1, 1, 1]} : vector<6x8x16xf32> to vector<2x8x16xf32>
    %42 = arith.truncf %39 : vector<2x8x16xf32> to vector<2x8x16xbf16>
    %43 = arith.truncf %40 : vector<2x8x16xf32> to vector<2x8x16xbf16>
    "tpu.trace_start"() <{level = 10 : i32, message = "nqd,nkd->nqk"}> : () -> ()
    %cst_23 = arith.constant dense<0.000000e+00> : vector<2x8x8xf32>
    %44 = tpu.matmul %42, %43, %cst_23 {dimension_numbers = #tpu.dot_dimension_numbers<[2], [2], [1], [1], [0, 0, 0, 1, 1, 1], [0], [0]>} : vector<2x8x16xbf16>, vector<2x8x16xbf16>, vector<2x8x8xf32> -> vector<2x8x8xf32>
    "tpu.trace_stop"() : () -> ()
    %cst_24 = arith.constant 2.500000e-01 : f32
    %45 = vector.broadcast %cst_24 : f32 to vector<2x8x8xf32>
    %46 = arith.mulf %44, %45 : vector<2x8x8xf32>
    %47 = vector.broadcast %1 : vector<1x1x8xf32> to vector<2x8x8xf32>
    %48 = arith.addf %46, %47 : vector<2x8x8xf32>
    %cst_25 = arith.constant dense<0xFF800000> : vector<2x8xf32>
    %49 = vector.multi_reduction <maximumf>, %48, %cst_25 [2] : vector<2x8x8xf32> to vector<2x8xf32>
    %50 = vector.shape_cast %49 : vector<2x8xf32> to vector<2x8x1xf32>
    %51 = vector.broadcast %50 : vector<2x8x1xf32> to vector<2x8x8xf32>
    %52 = arith.subf %48, %51 : vector<2x8x8xf32>
    %53 = math.exp %52 : vector<2x8x8xf32>
    %cst_26 = arith.constant dense<0.000000e+00> : vector<2x8xf32>
    %54 = vector.multi_reduction <add>, %53, %cst_26 [2] : vector<2x8x8xf32> to vector<2x8xf32>
    %55 = vector.shape_cast %54 : vector<2x8xf32> to vector<2x8x1xf32>
    %56 = tpu.reciprocal %55 {approx = true} : vector<2x8x1xf32> -> vector<2x8x1xf32>
    %57 = vector.broadcast %56 : vector<2x8x1xf32> to vector<2x8x8xf32>
    %58 = arith.mulf %53, %57 : vector<2x8x8xf32>
    %59 = arith.truncf %58 : vector<2x8x8xf32> to vector<2x8x8xbf16>
    %60 = arith.truncf %41 : vector<2x8x16xf32> to vector<2x8x16xbf16>
    "tpu.trace_start"() <{level = 10 : i32, message = "nqk,nkd->nqd"}> : () -> ()
    %cst_27 = arith.constant dense<0.000000e+00> : vector<2x8x16xf32>
    %61 = tpu.matmul %59, %60, %cst_27 {dimension_numbers = #tpu.dot_dimension_numbers<[2], [1], [1], [2], [0, 0, 0, 1, 1, 2], [0], [0]>} : vector<2x8x8xbf16>, vector<2x8x16xbf16>, vector<2x8x16xf32> -> vector<2x8x16xf32>
    "tpu.trace_stop"() : () -> ()
    %62 = arith.truncf %61 : vector<2x8x16xf32> to vector<2x8x16xbf16>
    %c0_28 = arith.constant 0 : index
    %c0_29 = arith.constant 0 : index
    %c0_30 = arith.constant 0 : index
    %c0_31 = arith.constant 0 : index
    %63 = vector.load %arg7[%c0_28, %c0_29, %c0_30, %c0_31] : memref<2x2x16x32xbf16, #tpu.memory_space<vmem>>, vector<1x2x16x32xbf16>
    %64 = vector.shape_cast %63 : vector<1x2x16x32xbf16> to vector<2x16x32xbf16>
    "tpu.trace_start"() <{level = 10 : i32, message = "nsd,ndh->nsh"}> : () -> ()
    %cst_32 = arith.constant dense<0.000000e+00> : vector<2x8x32xf32>
    %65 = tpu.matmul %62, %64, %cst_32 {dimension_numbers = #tpu.dot_dimension_numbers<[2], [1], [1], [2], [0, 0, 0, 1, 1, 2], [0], [0]>} : vector<2x8x16xbf16>, vector<2x16x32xbf16>, vector<2x8x32xf32> -> vector<2x8x32xf32>
    "tpu.trace_stop"() : () -> ()
    %cst_33 = arith.constant dense<0.000000e+00> : vector<8x32xf32>
    %66 = vector.multi_reduction <add>, %65, %cst_33 [0] : vector<2x8x32xf32> to vector<8x32xf32>
    %c0_34 = arith.constant 0 : index
    %c0_35 = arith.constant 0 : index
    %c0_36 = arith.constant 0 : index
    %67 = vector.load %arg8[%c0_34, %c0_35, %c0_36] : memref<2x1x32xf32, #tpu.memory_space<vmem>>, vector<1x1x32xf32>
    %68 = vector.shape_cast %67 : vector<1x1x32xf32> to vector<1x32xf32>
    %69 = vector.broadcast %68 : vector<1x32xf32> to vector<8x32xf32>
    %70 = arith.addf %66, %69 : vector<8x32xf32>
    %71 = arith.extf %28 : vector<8x32xbf16> to vector<8x32xf32>
    %72 = arith.addf %70, %71 : vector<8x32xf32>
    %c0_37 = arith.constant 0 : index
    %c0_38 = arith.constant 0 : index
    %c0_39 = arith.constant 0 : index
    %73 = vector.load %arg9[%c0_37, %c0_38, %c0_39] : memref<2x1x32xf32, #tpu.memory_space<vmem>>, vector<1x1x32xf32>
    %74 = vector.shape_cast %73 : vector<1x1x32xf32> to vector<1x32xf32>
    %c0_40 = arith.constant 0 : index
    %c0_41 = arith.constant 0 : index
    %c0_42 = arith.constant 0 : index
    %75 = vector.load %arg10[%c0_40, %c0_41, %c0_42] : memref<2x1x32xf32, #tpu.memory_space<vmem>>, vector<1x1x32xf32>
    %76 = vector.shape_cast %75 : vector<1x1x32xf32> to vector<1x32xf32>
    %cst_43 = arith.constant dense<0.000000e+00> : vector<8xf32>
    %77 = vector.multi_reduction <add>, %72, %cst_43 [1] : vector<8x32xf32> to vector<8xf32>
    %78 = vector.shape_cast %77 : vector<8xf32> to vector<8x1xf32>
    %cst_44 = arith.constant 3.200000e+01 : f32
    %79 = vector.broadcast %cst_44 : f32 to vector<8x1xf32>
    %80 = arith.divf %78, %79 : vector<8x1xf32>
    %81 = vector.broadcast %80 : vector<8x1xf32> to vector<8x32xf32>
    %82 = arith.subf %72, %81 : vector<8x32xf32>
    %83 = arith.mulf %82, %82 : vector<8x32xf32>
    %cst_45 = arith.constant dense<0.000000e+00> : vector<8xf32>
    %84 = vector.multi_reduction <add>, %83, %cst_45 [1] : vector<8x32xf32> to vector<8xf32>
    %85 = vector.shape_cast %84 : vector<8xf32> to vector<8x1xf32>
    %cst_46 = arith.constant 3.200000e+01 : f32
    %86 = vector.broadcast %cst_46 : f32 to vector<8x1xf32>
    %87 = arith.divf %85, %86 : vector<8x1xf32>
    %88 = vector.broadcast %80 : vector<8x1xf32> to vector<8x32xf32>
    %89 = arith.subf %72, %88 : vector<8x32xf32>
    %cst_47 = arith.constant 9.99999974E-6 : f32
    %90 = vector.broadcast %cst_47 : f32 to vector<8x1xf32>
    %91 = arith.addf %87, %90 : vector<8x1xf32>
    %92 = math.rsqrt %91 : vector<8x1xf32>
    %93 = vector.broadcast %92 : vector<8x1xf32> to vector<8x32xf32>
    %94 = arith.mulf %89, %93 : vector<8x32xf32>
    %95 = vector.broadcast %74 : vector<1x32xf32> to vector<8x32xf32>
    %96 = arith.mulf %94, %95 : vector<8x32xf32>
    %97 = vector.broadcast %76 : vector<1x32xf32> to vector<8x32xf32>
    %98 = arith.addf %96, %97 : vector<8x32xf32>
    %99 = arith.truncf %98 : vector<8x32xf32> to vector<8x32xbf16>
    %c0_48 = arith.constant 0 : index
    %c0_49 = arith.constant 0 : index
    %c0_50 = arith.constant 0 : index
    %100 = vector.load %arg11[%c0_48, %c0_49, %c0_50] : memref<2x32x64xbf16, #tpu.memory_space<vmem>>, vector<1x32x64xbf16>
    %101 = vector.shape_cast %100 : vector<1x32x64xbf16> to vector<32x64xbf16>
    %cst_51 = arith.constant dense<0.000000e+00> : vector<8x64xf32>
    %102 = tpu.matmul %99, %101, %cst_51 {dimension_numbers = #tpu.dot_dimension_numbers<[1], [0], [0], [1], [0, 0, 1, 1], [], []>} : vector<8x32xbf16>, vector<32x64xbf16>, vector<8x64xf32> -> vector<8x64xf32>
    %c0_52 = arith.constant 0 : index
    %c0_53 = arith.constant 0 : index
    %c0_54 = arith.constant 0 : index
    %103 = vector.load %arg12[%c0_52, %c0_53, %c0_54] : memref<2x1x64xf32, #tpu.memory_space<vmem>>, vector<1x1x64xf32>
    %104 = vector.shape_cast %103 : vector<1x1x64xf32> to vector<1x64xf32>
    %105 = vector.broadcast %104 : vector<1x64xf32> to vector<8x64xf32>
    %106 = arith.addf %102, %105 : vector<8x64xf32>
    %107 = arith.mulf %106, %106 : vector<8x64xf32>
    %108 = arith.mulf %106, %107 : vector<8x64xf32>
    %cst_55 = arith.constant 4.471500e-02 : f32
    %109 = vector.broadcast %cst_55 : f32 to vector<8x64xf32>
    %110 = arith.mulf %109, %108 : vector<8x64xf32>
    %111 = arith.addf %106, %110 : vector<8x64xf32>
    %cst_56 = arith.constant 0.797884583 : f32
    %112 = vector.broadcast %cst_56 : f32 to vector<8x64xf32>
    %113 = arith.mulf %112, %111 : vector<8x64xf32>
    %114 = math.tanh %113 : vector<8x64xf32>
    %cst_57 = arith.constant 1.000000e+00 : f32
    %115 = vector.broadcast %cst_57 : f32 to vector<8x64xf32>
    %116 = arith.addf %115, %114 : vector<8x64xf32>
    %cst_58 = arith.constant 5.000000e-01 : f32
    %117 = vector.broadcast %cst_58 : f32 to vector<8x64xf32>
    %118 = arith.mulf %117, %116 : vector<8x64xf32>
    %119 = arith.mulf %106, %118 : vector<8x64xf32>
    %120 = arith.truncf %119 : vector<8x64xf32> to vector<8x64xbf16>
    %c0_59 = arith.constant 0 : index
    %c0_60 = arith.constant 0 : index
    %c0_61 = arith.constant 0 : index
    %121 = vector.load %arg13[%c0_59, %c0_60, %c0_61] : memref<2x64x32xbf16, #tpu.memory_space<vmem>>, vector<1x64x32xbf16>
    %122 = vector.shape_cast %121 : vector<1x64x32xbf16> to vector<64x32xbf16>
    %cst_62 = arith.constant dense<0.000000e+00> : vector<8x32xf32>
    %123 = tpu.matmul %120, %122, %cst_62 {dimension_numbers = #tpu.dot_dimension_numbers<[1], [0], [0], [1], [0, 0, 1, 1], [], []>} : vector<8x64xbf16>, vector<64x32xbf16>, vector<8x32xf32> -> vector<8x32xf32>
    %c0_63 = arith.constant 0 : index
    %c0_64 = arith.constant 0 : index
    %c0_65 = arith.constant 0 : index
    %124 = vector.load %arg14[%c0_63, %c0_64, %c0_65] : memref<2x1x32xf32, #tpu.memory_space<vmem>>, vector<1x1x32xf32>
    %125 = vector.shape_cast %124 : vector<1x1x32xf32> to vector<1x32xf32>
    %126 = vector.broadcast %125 : vector<1x32xf32> to vector<8x32xf32>
    %127 = arith.addf %123, %126 : vector<8x32xf32>
    %128 = arith.extf %99 : vector<8x32xbf16> to vector<8x32xf32>
    %129 = arith.addf %127, %128 : vector<8x32xf32>
    %c0_66 = arith.constant 0 : index
    %c0_67 = arith.constant 0 : index
    %c0_68 = arith.constant 0 : index
    %130 = vector.load %arg15[%c0_66, %c0_67, %c0_68] : memref<2x1x32xf32, #tpu.memory_space<vmem>>, vector<1x1x32xf32>
    %131 = vector.shape_cast %130 : vector<1x1x32xf32> to vector<1x32xf32>
    %c0_69 = arith.constant 0 : index
    %c0_70 = arith.constant 0 : index
    %c0_71 = arith.constant 0 : index
    %132 = vector.load %arg16[%c0_69, %c0_70, %c0_71] : memref<2x1x32xf32, #tpu.memory_space<vmem>>, vector<1x1x32xf32>
    %133 = vector.shape_cast %132 : vector<1x1x32xf32> to vector<1x32xf32>
    %cst_72 = arith.constant dense<0.000000e+00> : vector<8xf32>
    %134 = vector.multi_reduction <add>, %129, %cst_72 [1] : vector<8x32xf32> to vector<8xf32>
    %135 = vector.shape_cast %134 : vector<8xf32> to vector<8x1xf32>
    %cst_73 = arith.constant 3.200000e+01 : f32
    %136 = vector.broadcast %cst_73 : f32 to vector<8x1xf32>
    %137 = arith.divf %135, %136 : vector<8x1xf32>
    %138 = vector.broadcast %137 : vector<8x1xf32> to vector<8x32xf32>
    %139 = arith.subf %129, %138 : vector<8x32xf32>
    %140 = arith.mulf %139, %139 : vector<8x32xf32>
    %cst_74 = arith.constant dense<0.000000e+00> : vector<8xf32>
    %141 = vector.multi_reduction <add>, %140, %cst_74 [1] : vector<8x32xf32> to vector<8xf32>
    %142 = vector.shape_cast %141 : vector<8xf32> to vector<8x1xf32>
    %cst_75 = arith.constant 3.200000e+01 : f32
    %143 = vector.broadcast %cst_75 : f32 to vector<8x1xf32>
    %144 = arith.divf %142, %143 : vector<8x1xf32>
    %145 = vector.broadcast %137 : vector<8x1xf32> to vector<8x32xf32>
    %146 = arith.subf %129, %145 : vector<8x32xf32>
    %cst_76 = arith.constant 9.99999974E-6 : f32
    %147 = vector.broadcast %cst_76 : f32 to vector<8x1xf32>
    %148 = arith.addf %144, %147 : vector<8x1xf32>
    %149 = math.rsqrt %148 : vector<8x1xf32>
    %150 = vector.broadcast %149 : vector<8x1xf32> to vector<8x32xf32>
    %151 = arith.mulf %146, %150 : vector<8x32xf32>
    %152 = vector.broadcast %131 : vector<1x32xf32> to vector<8x32xf32>
    %153 = arith.mulf %151, %152 : vector<8x32xf32>
    %154 = vector.broadcast %133 : vector<1x32xf32> to vector<8x32xf32>
    %155 = arith.addf %153, %154 : vector<8x32xf32>
    %156 = arith.truncf %155 : vector<8x32xf32> to vector<8x32xbf16>
    %157 = vector.shape_cast %156 : vector<8x32xbf16> to vector<1x8x32xbf16>
    %158 = vector.shape_cast %157 : vector<1x8x32xbf16> to vector<1x8x32xbf16>
    %159 = vector.broadcast %158 : vector<1x8x32xbf16> to vector<6x8x32xbf16>
    %c1 = arith.constant 1 : index
    %c0_77 = arith.constant 0 : index
    %c0_78 = arith.constant 0 : index
    %c0_79 = arith.constant 0 : index
    %160 = vector.load %arg5[%c1, %c0_77, %c0_78, %c0_79] : memref<2x6x32x16xbf16, #tpu.memory_space<vmem>>, vector<1x6x32x16xbf16>
    %161 = vector.shape_cast %160 : vector<1x6x32x16xbf16> to vector<6x32x16xbf16>
    "tpu.trace_start"() <{level = 10 : i32, message = "gsh,ghd->gsd"}> : () -> ()
    %cst_80 = arith.constant dense<0.000000e+00> : vector<6x8x16xf32>
    %162 = tpu.matmul %159, %161, %cst_80 {dimension_numbers = #tpu.dot_dimension_numbers<[2], [1], [1], [2], [0, 0, 0, 1, 1, 2], [0], [0]>} : vector<6x8x32xbf16>, vector<6x32x16xbf16>, vector<6x8x16xf32> -> vector<6x8x16xf32>
    "tpu.trace_stop"() : () -> ()
    %c1_81 = arith.constant 1 : index
    %c0_82 = arith.constant 0 : index
    %c0_83 = arith.constant 0 : index
    %c0_84 = arith.constant 0 : index
    %163 = vector.load %arg6[%c1_81, %c0_82, %c0_83, %c0_84] : memref<2x6x1x16xf32, #tpu.memory_space<vmem>>, vector<1x6x1x16xf32>
    %164 = vector.shape_cast %163 : vector<1x6x1x16xf32> to vector<6x1x16xf32>
    %165 = vector.broadcast %164 : vector<6x1x16xf32> to vector<6x8x16xf32>
    %166 = arith.addf %162, %165 : vector<6x8x16xf32>
    %167 = vector.extract_strided_slice %166 {offsets = [0, 0, 0], sizes = [2, 8, 16], strides = [1, 1, 1]} : vector<6x8x16xf32> to vector<2x8x16xf32>
    %168 = vector.extract_strided_slice %166 {offsets = [2, 0, 0], sizes = [2, 8, 16], strides = [1, 1, 1]} : vector<6x8x16xf32> to vector<2x8x16xf32>
    %169 = vector.extract_strided_slice %166 {offsets = [4, 0, 0], sizes = [2, 8, 16], strides = [1, 1, 1]} : vector<6x8x16xf32> to vector<2x8x16xf32>
    %170 = arith.truncf %167 : vector<2x8x16xf32> to vector<2x8x16xbf16>
    %171 = arith.truncf %168 : vector<2x8x16xf32> to vector<2x8x16xbf16>
    "tpu.trace_start"() <{level = 10 : i32, message = "nqd,nkd->nqk"}> : () -> ()
    %cst_85 = arith.constant dense<0.000000e+00> : vector<2x8x8xf32>
    %172 = tpu.matmul %170, %171, %cst_85 {dimension_numbers = #tpu.dot_dimension_numbers<[2], [2], [1], [1], [0, 0, 0, 1, 1, 1], [0], [0]>} : vector<2x8x16xbf16>, vector<2x8x16xbf16>, vector<2x8x8xf32> -> vector<2x8x8xf32>
    "tpu.trace_stop"() : () -> ()
    %cst_86 = arith.constant 2.500000e-01 : f32
    %173 = vector.broadcast %cst_86 : f32 to vector<2x8x8xf32>
    %174 = arith.mulf %172, %173 : vector<2x8x8xf32>
    %175 = vector.broadcast %1 : vector<1x1x8xf32> to vector<2x8x8xf32>
    %176 = arith.addf %174, %175 : vector<2x8x8xf32>
    %cst_87 = arith.constant dense<0xFF800000> : vector<2x8xf32>
    %177 = vector.multi_reduction <maximumf>, %176, %cst_87 [2] : vector<2x8x8xf32> to vector<2x8xf32>
    %178 = vector.shape_cast %177 : vector<2x8xf32> to vector<2x8x1xf32>
    %179 = vector.broadcast %178 : vector<2x8x1xf32> to vector<2x8x8xf32>
    %180 = arith.subf %176, %179 : vector<2x8x8xf32>
    %181 = math.exp %180 : vector<2x8x8xf32>
    %cst_88 = arith.constant dense<0.000000e+00> : vector<2x8xf32>
    %182 = vector.multi_reduction <add>, %181, %cst_88 [2] : vector<2x8x8xf32> to vector<2x8xf32>
    %183 = vector.shape_cast %182 : vector<2x8xf32> to vector<2x8x1xf32>
    %184 = tpu.reciprocal %183 {approx = true} : vector<2x8x1xf32> -> vector<2x8x1xf32>
    %185 = vector.broadcast %184 : vector<2x8x1xf32> to vector<2x8x8xf32>
    %186 = arith.mulf %181, %185 : vector<2x8x8xf32>
    %187 = arith.truncf %186 : vector<2x8x8xf32> to vector<2x8x8xbf16>
    %188 = arith.truncf %169 : vector<2x8x16xf32> to vector<2x8x16xbf16>
    "tpu.trace_start"() <{level = 10 : i32, message = "nqk,nkd->nqd"}> : () -> ()
    %cst_89 = arith.constant dense<0.000000e+00> : vector<2x8x16xf32>
    %189 = tpu.matmul %187, %188, %cst_89 {dimension_numbers = #tpu.dot_dimension_numbers<[2], [1], [1], [2], [0, 0, 0, 1, 1, 2], [0], [0]>} : vector<2x8x8xbf16>, vector<2x8x16xbf16>, vector<2x8x16xf32> -> vector<2x8x16xf32>
    "tpu.trace_stop"() : () -> ()
    %190 = arith.truncf %189 : vector<2x8x16xf32> to vector<2x8x16xbf16>
    %c1_90 = arith.constant 1 : index
    %c0_91 = arith.constant 0 : index
    %c0_92 = arith.constant 0 : index
    %c0_93 = arith.constant 0 : index
    %191 = vector.load %arg7[%c1_90, %c0_91, %c0_92, %c0_93] : memref<2x2x16x32xbf16, #tpu.memory_space<vmem>>, vector<1x2x16x32xbf16>
    %192 = vector.shape_cast %191 : vector<1x2x16x32xbf16> to vector<2x16x32xbf16>
    "tpu.trace_start"() <{level = 10 : i32, message = "nsd,ndh->nsh"}> : () -> ()
    %cst_94 = arith.constant dense<0.000000e+00> : vector<2x8x32xf32>
    %193 = tpu.matmul %190, %192, %cst_94 {dimension_numbers = #tpu.dot_dimension_numbers<[2], [1], [1], [2], [0, 0, 0, 1, 1, 2], [0], [0]>} : vector<2x8x16xbf16>, vector<2x16x32xbf16>, vector<2x8x32xf32> -> vector<2x8x32xf32>
    "tpu.trace_stop"() : () -> ()
    %cst_95 = arith.constant dense<0.000000e+00> : vector<8x32xf32>
    %194 = vector.multi_reduction <add>, %193, %cst_95 [0] : vector<2x8x32xf32> to vector<8x32xf32>
    %c1_96 = arith.constant 1 : index
    %c0_97 = arith.constant 0 : index
    %c0_98 = arith.constant 0 : index
    %195 = vector.load %arg8[%c1_96, %c0_97, %c0_98] : memref<2x1x32xf32, #tpu.memory_space<vmem>>, vector<1x1x32xf32>
    %196 = vector.shape_cast %195 : vector<1x1x32xf32> to vector<1x32xf32>
    %197 = vector.broadcast %196 : vector<1x32xf32> to vector<8x32xf32>
    %198 = arith.addf %194, %197 : vector<8x32xf32>
    %199 = arith.extf %156 : vector<8x32xbf16> to vector<8x32xf32>
    %200 = arith.addf %198, %199 : vector<8x32xf32>
    %c1_99 = arith.constant 1 : index
    %c0_100 = arith.constant 0 : index
    %c0_101 = arith.constant 0 : index
    %201 = vector.load %arg9[%c1_99, %c0_100, %c0_101] : memref<2x1x32xf32, #tpu.memory_space<vmem>>, vector<1x1x32xf32>
    %202 = vector.shape_cast %201 : vector<1x1x32xf32> to vector<1x32xf32>
    %c1_102 = arith.constant 1 : index
    %c0_103 = arith.constant 0 : index
    %c0_104 = arith.constant 0 : index
    %203 = vector.load %arg10[%c1_102, %c0_103, %c0_104] : memref<2x1x32xf32, #tpu.memory_space<vmem>>, vector<1x1x32xf32>
    %204 = vector.shape_cast %203 : vector<1x1x32xf32> to vector<1x32xf32>
    %cst_105 = arith.constant dense<0.000000e+00> : vector<8xf32>
    %205 = vector.multi_reduction <add>, %200, %cst_105 [1] : vector<8x32xf32> to vector<8xf32>
    %206 = vector.shape_cast %205 : vector<8xf32> to vector<8x1xf32>
    %cst_106 = arith.constant 3.200000e+01 : f32
    %207 = vector.broadcast %cst_106 : f32 to vector<8x1xf32>
    %208 = arith.divf %206, %207 : vector<8x1xf32>
    %209 = vector.broadcast %208 : vector<8x1xf32> to vector<8x32xf32>
    %210 = arith.subf %200, %209 : vector<8x32xf32>
    %211 = arith.mulf %210, %210 : vector<8x32xf32>
    %cst_107 = arith.constant dense<0.000000e+00> : vector<8xf32>
    %212 = vector.multi_reduction <add>, %211, %cst_107 [1] : vector<8x32xf32> to vector<8xf32>
    %213 = vector.shape_cast %212 : vector<8xf32> to vector<8x1xf32>
    %cst_108 = arith.constant 3.200000e+01 : f32
    %214 = vector.broadcast %cst_108 : f32 to vector<8x1xf32>
    %215 = arith.divf %213, %214 : vector<8x1xf32>
    %216 = vector.broadcast %208 : vector<8x1xf32> to vector<8x32xf32>
    %217 = arith.subf %200, %216 : vector<8x32xf32>
    %cst_109 = arith.constant 9.99999974E-6 : f32
    %218 = vector.broadcast %cst_109 : f32 to vector<8x1xf32>
    %219 = arith.addf %215, %218 : vector<8x1xf32>
    %220 = math.rsqrt %219 : vector<8x1xf32>
    %221 = vector.broadcast %220 : vector<8x1xf32> to vector<8x32xf32>
    %222 = arith.mulf %217, %221 : vector<8x32xf32>
    %223 = vector.broadcast %202 : vector<1x32xf32> to vector<8x32xf32>
    %224 = arith.mulf %222, %223 : vector<8x32xf32>
    %225 = vector.broadcast %204 : vector<1x32xf32> to vector<8x32xf32>
    %226 = arith.addf %224, %225 : vector<8x32xf32>
    %227 = arith.truncf %226 : vector<8x32xf32> to vector<8x32xbf16>
    %c1_110 = arith.constant 1 : index
    %c0_111 = arith.constant 0 : index
    %c0_112 = arith.constant 0 : index
    %228 = vector.load %arg11[%c1_110, %c0_111, %c0_112] : memref<2x32x64xbf16, #tpu.memory_space<vmem>>, vector<1x32x64xbf16>
    %229 = vector.shape_cast %228 : vector<1x32x64xbf16> to vector<32x64xbf16>
    %cst_113 = arith.constant dense<0.000000e+00> : vector<8x64xf32>
    %230 = tpu.matmul %227, %229, %cst_113 {dimension_numbers = #tpu.dot_dimension_numbers<[1], [0], [0], [1], [0, 0, 1, 1], [], []>} : vector<8x32xbf16>, vector<32x64xbf16>, vector<8x64xf32> -> vector<8x64xf32>
    %c1_114 = arith.constant 1 : index
    %c0_115 = arith.constant 0 : index
    %c0_116 = arith.constant 0 : index
    %231 = vector.load %arg12[%c1_114, %c0_115, %c0_116] : memref<2x1x64xf32, #tpu.memory_space<vmem>>, vector<1x1x64xf32>
    %232 = vector.shape_cast %231 : vector<1x1x64xf32> to vector<1x64xf32>
    %233 = vector.broadcast %232 : vector<1x64xf32> to vector<8x64xf32>
    %234 = arith.addf %230, %233 : vector<8x64xf32>
    %235 = arith.mulf %234, %234 : vector<8x64xf32>
    %236 = arith.mulf %234, %235 : vector<8x64xf32>
    %cst_117 = arith.constant 4.471500e-02 : f32
    %237 = vector.broadcast %cst_117 : f32 to vector<8x64xf32>
    %238 = arith.mulf %237, %236 : vector<8x64xf32>
    %239 = arith.addf %234, %238 : vector<8x64xf32>
    %cst_118 = arith.constant 0.797884583 : f32
    %240 = vector.broadcast %cst_118 : f32 to vector<8x64xf32>
    %241 = arith.mulf %240, %239 : vector<8x64xf32>
    %242 = math.tanh %241 : vector<8x64xf32>
    %cst_119 = arith.constant 1.000000e+00 : f32
    %243 = vector.broadcast %cst_119 : f32 to vector<8x64xf32>
    %244 = arith.addf %243, %242 : vector<8x64xf32>
    %cst_120 = arith.constant 5.000000e-01 : f32
    %245 = vector.broadcast %cst_120 : f32 to vector<8x64xf32>
    %246 = arith.mulf %245, %244 : vector<8x64xf32>
    %247 = arith.mulf %234, %246 : vector<8x64xf32>
    %248 = arith.truncf %247 : vector<8x64xf32> to vector<8x64xbf16>
    %c1_121 = arith.constant 1 : index
    %c0_122 = arith.constant 0 : index
    %c0_123 = arith.constant 0 : index
    %249 = vector.load %arg13[%c1_121, %c0_122, %c0_123] : memref<2x64x32xbf16, #tpu.memory_space<vmem>>, vector<1x64x32xbf16>
    %250 = vector.shape_cast %249 : vector<1x64x32xbf16> to vector<64x32xbf16>
    %cst_124 = arith.constant dense<0.000000e+00> : vector<8x32xf32>
    %251 = tpu.matmul %248, %250, %cst_124 {dimension_numbers = #tpu.dot_dimension_numbers<[1], [0], [0], [1], [0, 0, 1, 1], [], []>} : vector<8x64xbf16>, vector<64x32xbf16>, vector<8x32xf32> -> vector<8x32xf32>
    %c1_125 = arith.constant 1 : index
    %c0_126 = arith.constant 0 : index
    %c0_127 = arith.constant 0 : index
    %252 = vector.load %arg14[%c1_125, %c0_126, %c0_127] : memref<2x1x32xf32, #tpu.memory_space<vmem>>, vector<1x1x32xf32>
    %253 = vector.shape_cast %252 : vector<1x1x32xf32> to vector<1x32xf32>
    %254 = vector.broadcast %253 : vector<1x32xf32> to vector<8x32xf32>
    %255 = arith.addf %251, %254 : vector<8x32xf32>
    %256 = arith.extf %227 : vector<8x32xbf16> to vector<8x32xf32>
    %257 = arith.addf %255, %256 : vector<8x32xf32>
    %c1_128 = arith.constant 1 : index
    %c0_129 = arith.constant 0 : index
    %c0_130 = arith.constant 0 : index
    %258 = vector.load %arg15[%c1_128, %c0_129, %c0_130] : memref<2x1x32xf32, #tpu.memory_space<vmem>>, vector<1x1x32xf32>
    %259 = vector.shape_cast %258 : vector<1x1x32xf32> to vector<1x32xf32>
    %c1_131 = arith.constant 1 : index
    %c0_132 = arith.constant 0 : index
    %c0_133 = arith.constant 0 : index
    %260 = vector.load %arg16[%c1_131, %c0_132, %c0_133] : memref<2x1x32xf32, #tpu.memory_space<vmem>>, vector<1x1x32xf32>
    %261 = vector.shape_cast %260 : vector<1x1x32xf32> to vector<1x32xf32>
    %cst_134 = arith.constant dense<0.000000e+00> : vector<8xf32>
    %262 = vector.multi_reduction <add>, %257, %cst_134 [1] : vector<8x32xf32> to vector<8xf32>
    %263 = vector.shape_cast %262 : vector<8xf32> to vector<8x1xf32>
    %cst_135 = arith.constant 3.200000e+01 : f32
    %264 = vector.broadcast %cst_135 : f32 to vector<8x1xf32>
    %265 = arith.divf %263, %264 : vector<8x1xf32>
    %266 = vector.broadcast %265 : vector<8x1xf32> to vector<8x32xf32>
    %267 = arith.subf %257, %266 : vector<8x32xf32>
    %268 = arith.mulf %267, %267 : vector<8x32xf32>
    %cst_136 = arith.constant dense<0.000000e+00> : vector<8xf32>
    %269 = vector.multi_reduction <add>, %268, %cst_136 [1] : vector<8x32xf32> to vector<8xf32>
    %270 = vector.shape_cast %269 : vector<8xf32> to vector<8x1xf32>
    %cst_137 = arith.constant 3.200000e+01 : f32
    %271 = vector.broadcast %cst_137 : f32 to vector<8x1xf32>
    %272 = arith.divf %270, %271 : vector<8x1xf32>
    %273 = vector.broadcast %265 : vector<8x1xf32> to vector<8x32xf32>
    %274 = arith.subf %257, %273 : vector<8x32xf32>
    %cst_138 = arith.constant 9.99999974E-6 : f32
    %275 = vector.broadcast %cst_138 : f32 to vector<8x1xf32>
    %276 = arith.addf %272, %275 : vector<8x1xf32>
    %277 = math.rsqrt %276 : vector<8x1xf32>
    %278 = vector.broadcast %277 : vector<8x1xf32> to vector<8x32xf32>
    %279 = arith.mulf %274, %278 : vector<8x32xf32>
    %280 = vector.broadcast %259 : vector<1x32xf32> to vector<8x32xf32>
    %281 = arith.mulf %279, %280 : vector<8x32xf32>
    %282 = vector.broadcast %261 : vector<1x32xf32> to vector<8x32xf32>
    %283 = arith.addf %281, %282 : vector<8x32xf32>
    %284 = arith.truncf %283 : vector<8x32xf32> to vector<8x32xbf16>
    %285 = vector.extract_strided_slice %284 {offsets = [0, 0], sizes = [1, 32], strides = [1, 1]} : vector<8x32xbf16> to vector<1x32xbf16>
    %c0_139 = arith.constant 0 : index
    %c0_140 = arith.constant 0 : index
    %286 = vector.load %arg17[%c0_139, %c0_140] : memref<32x128xbf16, #tpu.memory_space<vmem>>, vector<32x128xbf16>
    %cst_141 = arith.constant dense<0.000000e+00> : vector<1x128xf32>
    %287 = tpu.matmul %285, %286, %cst_141 {dimension_numbers = #tpu.dot_dimension_numbers<[1], [0], [0], [1], [0, 0, 1, 1], [], []>} : vector<1x32xbf16>, vector<32x128xbf16>, vector<1x128xf32> -> vector<1x128xf32>
    %c0_142 = arith.constant 0 : index
    %c0_143 = arith.constant 0 : index
    %288 = vector.load %arg18[%c0_142, %c0_143] : memref<1x128xf32, #tpu.memory_space<vmem>>, vector<1x128xf32>
    %289 = arith.addf %287, %288 : vector<1x128xf32>
    %290 = math.tanh %289 : vector<1x128xf32>
    %c0_144 = arith.constant 0 : index
    %c0_145 = arith.constant 0 : index
    %c0_146 = arith.constant 0 : index
    %291 = vector.load %arg21[%c0_144, %c0_145, %c0_146] : memref<1x1x128xf32, #tpu.memory_space<vmem>>, vector<1x1x128xf32>
    %292 = vector.shape_cast %291 : vector<1x1x128xf32> to vector<1x128xf32>
    %293 = vector.shape_cast %290 : vector<1x128xf32> to vector<1x1x128xf32>
    tpu.vector_store %arg21[%c0_144, %c0_145, %c0_146], %293 {strides = array<i32>} : memref<1x1x128xf32, #tpu.memory_space<vmem>>, vector<1x1x128xf32>,
    %294 = arith.truncf %290 : vector<1x128xf32> to vector<1x128xbf16>
    %c0_147 = arith.constant 0 : index
    %c0_148 = arith.constant 0 : index
    %295 = vector.load %arg19[%c0_147, %c0_148] : memref<128x128xbf16, #tpu.memory_space<vmem>>, vector<128x128xbf16>
    %cst_149 = arith.constant dense<0.000000e+00> : vector<1x128xf32>
    %296 = tpu.matmul %294, %295, %cst_149 {dimension_numbers = #tpu.dot_dimension_numbers<[1], [0], [0], [1], [0, 0, 1, 1], [], []>} : vector<1x128xbf16>, vector<128x128xbf16>, vector<1x128xf32> -> vector<1x128xf32>
    %c0_150 = arith.constant 0 : index
    %c0_151 = arith.constant 0 : index
    %297 = vector.load %arg20[%c0_150, %c0_151] : memref<1x128xf32, #tpu.memory_space<vmem>>, vector<1x128xf32>
    %298 = arith.addf %296, %297 : vector<1x128xf32>
    %c0_152 = arith.constant 0 : index
    %c0_153 = arith.constant 0 : index
    %c0_154 = arith.constant 0 : index
    %299 = vector.load %arg22[%c0_152, %c0_153, %c0_154] : memref<1x1x128xf32, #tpu.memory_space<vmem>>, vector<1x1x128xf32>
    %300 = vector.shape_cast %299 : vector<1x1x128xf32> to vector<1x128xf32>
    %301 = vector.shape_cast %298 : vector<1x128xf32> to vector<1x1x128xf32>
    tpu.vector_store %arg22[%c0_152, %c0_153, %c0_154], %301 {strides = array<i32>} : memref<1x1x128xf32, #tpu.memory_space<vmem>>, vector<1x1x128xf32>,
    return
  }
  func.func @transform_0(%arg0: i32) -> (i32, i32, i32) {
    %c0_i32 = arith.constant 0 : i32
    %c0_i32_0 = arith.constant 0 : i32
    %c0_i32_1 = arith.constant 0 : i32
    return %arg0, %c0_i32, %c0_i32_0 : i32, i32, i32
  }
  func.func @transform_1(%arg0: i32) -> (i32, i32, i32, i32) {
    %c0_i32 = arith.constant 0 : i32
    %c0_i32_0 = arith.constant 0 : i32
    %c0_i32_1 = arith.constant 0 : i32
    %c0_i32_2 = arith.constant 0 : i32
    return %arg0, %c0_i32, %c0_i32_0, %c0_i32_1 : i32, i32, i32, i32
  }
  func.func @transform_2(%arg0: i32) -> (i32, i32) {
    %c0_i32 = arith.constant 0 : i32
    %c0_i32_0 = arith.constant 0 : i32
    %c0_i32_1 = arith.constant 0 : i32
    return %c0_i32, %c0_i32_0 : i32, i32
  }
  func.func @transform_3(%arg0: i32) -> (i32, i32) {
    %c0_i32 = arith.constant 0 : i32
    %c0_i32_0 = arith.constant 0 : i32
    %c0_i32_1 = arith.constant 0 : i32
    return %c0_i32, %c0_i32_0 : i32, i32
  }
  func.func @transform_4(%arg0: i32) -> (i32, i32, i32, i32) {
    %c0_i32 = arith.constant 0 : i32
    %c0_i32_0 = arith.constant 0 : i32
    %c0_i32_1 = arith.constant 0 : i32
    %c0_i32_2 = arith.constant 0 : i32
    %c0_i32_3 = arith.constant 0 : i32
    return %c0_i32, %c0_i32_0, %c0_i32_1, %c0_i32_2 : i32, i32, i32, i32
  }
  func.func @transform_5(%arg0: i32) -> (i32, i32, i32, i32) {
    %c0_i32 = arith.constant 0 : i32
    %c0_i32_0 = arith.constant 0 : i32
    %c0_i32_1 = arith.constant 0 : i32
    %c0_i32_2 = arith.constant 0 : i32
    %c0_i32_3 = arith.constant 0 : i32
    return %c0_i32, %c0_i32_0, %c0_i32_1, %c0_i32_2 : i32, i32, i32, i32
  }
  func.func @transform_6(%arg0: i32) -> (i32, i32, i32, i32) {
    %c0_i32 = arith.constant 0 : i32
    %c0_i32_0 = arith.constant 0 : i32
    %c0_i32_1 = arith.constant 0 : i32
    %c0_i32_2 = arith.constant 0 : i32
    %c0_i32_3 = arith.constant 0 : i32
    return %c0_i32, %c0_i32_0, %c0_i32_1, %c0_i32_2 : i32, i32, i32, i32
  }
  func.func @transform_7(%arg0: i32) -> (i32, i32, i32) {
    %c0_i32 = arith.constant 0 : i32
    %c0_i32_0 = arith.constant 0 : i32
    %c0_i32_1 = arith.constant 0 : i32
    %c0_i32_2 = arith.constant 0 : i32
    return %c0_i32, %c0_i32_0, %c0_i32_1 : i32, i32, i32
  }
  func.func @transform_8(%arg0: i32) -> (i32, i32, i32) {
    %c0_i32 = arith.constant 0 : i32
    %c0_i32_0 = arith.constant 0 : i32
    %c0_i32_1 = arith.constant 0 : i32
    %c0_i32_2 = arith.constant 0 : i32
    return %c0_i32, %c0_i32_0, %c0_i32_1 : i32, i32, i32
  }
  func.func @transform_9(%arg0: i32) -> (i32, i32, i32) {
    %c0_i32 = arith.constant 0 : i32
    %c0_i32_0 = arith.constant 0 : i32
    %c0_i32_1 = arith.constant 0 : i32
    %c0_i32_2 = arith.constant 0 : i32
    return %c0_i32, %c0_i32_0, %c0_i32_1 : i32, i32, i32
  }
  func.func @transform_10(%arg0: i32) -> (i32, i32, i32) {
    %c0_i32 = arith.constant 0 : i32
    %c0_i32_0 = arith.constant 0 : i32
    %c0_i32_1 = arith.constant 0 : i32
    %c0_i32_2 = arith.constant 0 : i32
    return %c0_i32, %c0_i32_0, %c0_i32_1 : i32, i32, i32
  }
  func.func @transform_11(%arg0: i32) -> (i32, i32, i32) {
    %c0_i32 = arith.constant 0 : i32
    %c0_i32_0 = arith.constant 0 : i32
    %c0_i32_1 = arith.constant 0 : i32
    %c0_i32_2 = arith.constant 0 : i32
    return %c0_i32, %c0_i32_0, %c0_i32_1 : i32, i32, i32
  }
  func.func @transform_12(%arg0: i32) -> (i32, i32, i32) {
    %c0_i32 = arith.constant 0 : i32
    %c0_i32_0 = arith.constant 0 : i32
    %c0_i32_1 = arith.constant 0 : i32
    %c0_i32_2 = arith.constant 0 : i32
    return %c0_i32, %c0_i32_0, %c0_i32_1 : i32, i32, i32
  }
  func.func @transform_13(%arg0: i32) -> (i32, i32, i32) {
    %c0_i32 = arith.constant 0 : i32
    %c0_i32_0 = arith.constant 0 : i32
    %c0_i32_1 = arith.constant 0 : i32
    %c0_i32_2 = arith.constant 0 : i32
    return %c0_i32, %c0_i32_0, %c0_i32_1 : i32, i32, i32
  }
  func.func @transform_14(%arg0: i32) -> (i32, i32, i32) {
    %c0_i32 = arith.constant 0 : i32
    %c0_i32_0 = arith.constant 0 : i32
    %c0_i32_1 = arith.constant 0 : i32
    %c0_i32_2 = arith.constant 0 : i32
    return %c0_i32, %c0_i32_0, %c0_i32_1 : i32, i32, i32
  }
  func.func @transform_15(%arg0: i32) -> (i32, i32, i32) {
    %c0_i32 = arith.constant 0 : i32
    %c0_i32_0 = arith.constant 0 : i32
    %c0_i32_1 = arith.constant 0 : i32
    %c0_i32_2 = arith.constant 0 : i32
    return %c0_i32, %c0_i32_0, %c0_i32_1 : i32, i32, i32
  }
  func.func @transform_16(%arg0: i32) -> (i32, i32) {
    %c0_i32 = arith.constant 0 : i32
    %c0_i32_0 = arith.constant 0 : i32
    %c0_i32_1 = arith.constant 0 : i32
    return %c0_i32, %c0_i32_0 : i32, i32
  }
  func.func @transform_17(%arg0: i32) -> (i32, i32) {
    %c0_i32 = arith.constant 0 : i32
    %c0_i32_0 = arith.constant 0 : i32
    %c0_i32_1 = arith.constant 0 : i32
    return %c0_i32, %c0_i32_0 : i32, i32
  }
  func.func @transform_18(%arg0: i32) -> (i32, i32) {
    %c0_i32 = arith.constant 0 : i32
    %c0_i32_0 = arith.constant 0 : i32
    %c0_i32_1 = arith.constant 0 : i32
    return %c0_i32, %c0_i32_0 : i32, i32
  }
  func.func @transform_19(%arg0: i32) -> (i32, i32) {
    %c0_i32 = arith.constant 0 : i32
    %c0_i32_0 = arith.constant 0 : i32
    %c0_i32_1 = arith.constant 0 : i32
    return %c0_i32, %c0_i32_0 : i32, i32
  }
  func.func @transform_20(%arg0: i32) -> (i32, i32, i32) {
    %c0_i32 = arith.constant 0 : i32
    %c0_i32_0 = arith.constant 0 : i32
    %c0_i32_1 = arith.constant 0 : i32
    return %arg0, %c0_i32, %c0_i32_0 : i32, i32, i32
  }
  func.func @transform_21(%arg0: i32) -> (i32, i32, i32) {
    %c0_i32 = arith.constant 0 : i32
    %c0_i32_0 = arith.constant 0 : i32
    %c0_i32_1 = arith.constant 0 : i32
    return %arg0, %c0_i32, %c0_i32_0 : i32, i32, i32
  }
}

</mosaic_0001>

<llo_original>
// kernel: roberta_multilabel_forward.1
$region0: #{roberta_multilabel_forward.1}
  #allocation0 [shape = 'u32[]', space=smem, size = 0x4, offset = 0x4, fixed_abs, tag = 'smem constant byte address 0x4 - core index']
  #allocation1 [shape = 'u32[72,128]{1,0:T(1,128)}', space=vmem, size = 0x9000, scoped, tag = 'internal scratch']
  %s0 = inlined_call_operand.vmem [shape: f32[2,8,32], index: 0, kind: input, shape index: {}]
  %s1 = inlined_call_operand.vmem [shape: f32[2,1,1,8], index: 1, kind: input, shape index: {}]
  %s2 = inlined_call_operand.vmem [shape: f32[1,32], index: 2, kind: input, shape index: {}]
  %s3 = inlined_call_operand.vmem [shape: f32[1,32], index: 3, kind: input, shape index: {}]
  %s4 = inlined_call_operand.vmem [shape: bf16[2,6,32,16], index: 4, kind: input, shape index: {}]
  %s5 = inlined_call_operand.vmem [shape: f32[2,6,1,16], index: 5, kind: input, shape index: {}]
  %s6 = inlined_call_operand.vmem [shape: bf16[2,2,16,32], index: 6, kind: input, shape index: {}]
  %s7 = inlined_call_operand.vmem [shape: f32[2,1,32], index: 7, kind: input, shape index: {}]
  %s8 = inlined_call_operand.vmem [shape: f32[2,1,32], index: 8, kind: input, shape index: {}]
  %s9 = inlined_call_operand.vmem [shape: f32[2,1,32], index: 9, kind: input, shape index: {}]
  %s10 = inlined_call_operand.vmem [shape: bf16[2,32,64], index: 10, kind: input, shape index: {}]
  %s11 = inlined_call_operand.vmem [shape: f32[2,1,64], index: 11, kind: input, shape index: {}]
  %s12 = inlined_call_operand.vmem [shape: bf16[2,64,32], index: 12, kind: input, shape index: {}]
  %s13 = inlined_call_operand.vmem [shape: f32[2,1,32], index: 13, kind: input, shape index: {}]
  %s14 = inlined_call_operand.vmem [shape: f32[2,1,32], index: 14, kind: input, shape index: {}]
  %s15 = inlined_call_operand.vmem [shape: f32[2,1,32], index: 15, kind: input, shape index: {}]
  %s16 = inlined_call_operand.vmem [shape: bf16[32,128], index: 16, kind: input, shape index: {}]
  %s17 = inlined_call_operand.vmem [shape: f32[1,128], index: 17, kind: input, shape index: {}]
  %s18 = inlined_call_operand.vmem [shape: bf16[128,128], index: 18, kind: input, shape index: {}]
  %s19 = inlined_call_operand.vmem [shape: f32[1,128], index: 19, kind: input, shape index: {}]
  %s20 = inlined_call_operand.hbm [shape: f32[2,1,128], index: 20, kind: output, shape index: {0}]
  %s21 = inlined_call_operand.hbm [shape: f32[2,1,128], index: 21, kind: output, shape index: {1}]
  %22 = xla_tuple %s20, %s21
  %s23 = sld [smem:[#allocation0]]
  $region121: #{roberta_multilabel_forward.1} parent=0
    _
  %s25 = ssub.s32 1, %s23
  %s26 = scalar_select 0, %s25, %s23
  $region1: #{roberta_multilabel_forward.1} parent=0
    #allocation2 [shape = 'u8[1024]{0}', space=vmem, size = 0x400, scoped, tag = 'output window, operand 0']
    #allocation3 [shape = 's32[2]{0}', space=sflag, size = 0x8, scoped, tag = 'scoped memory for roberta_multilabel_forward.1']
    #allocation4 [shape = 'u8[1024]{0}', space=vmem, size = 0x400, scoped, tag = 'output window, operand 1']
    #allocation5 [shape = 's32[2]{0}', space=sflag, size = 0x8, scoped, tag = 'scoped memory for roberta_multilabel_forward.1']
    %27 = vsyncpa [#allocation3], 0
    %s28 = scalar_lea.sflag [#allocation3], 1
    %29 = vsyncpa %s28, 0
    %30 = vsyncpa [#allocation5], 0
    %s31 = scalar_lea.sflag [#allocation5], 1
    %32 = vsyncpa %s31, 0
    loop: start=0, step=1, limit=4
    $region2: #{roberta_multilabel_forward.1} parent=1 // loop_pre_header
      _
    $region3: #{roberta_multilabel_forward.1} parent=1 // loop_header
      %s34 = sphi 0, %s38
      %p35 = scmp.ge.s32.totalorder %s34, 4
      %s44 = sphi 0, %s46
      %s47 = sphi 0, %s44
      %s48 = sphi 0, %s47
      %s64 = sphi 0, %s48
      %s70 = sphi 0, %s72
      %s73 = sphi 0, %s70
      %s74 = sphi 0, %s73
      %s90 = sphi 0, %s74
      %s94 = sphi 0, %s94
      %s96 = sphi 0, %s94
      %s97 = sphi 0, %s96
      %s111 = sphi 0, %s97
      %s115 = sphi 0, %s115
      %s117 = sphi 0, %s115
      %s118 = sphi 0, %s117
      %s132 = sphi 0, %s118
      %s136 = sphi 0, %s136
      %s138 = sphi 0, %s136
      %s139 = sphi 0, %s138
      %s153 = sphi 0, %s139
      %s157 = sphi 0, %s157
      %s159 = sphi 0, %s157
      %s160 = sphi 0, %s159
      %s174 = sphi 0, %s160
      %s178 = sphi 0, %s178
      %s180 = sphi 0, %s178
      %s181 = sphi 0, %s180
      %s195 = sphi 0, %s181
      %s199 = sphi 0, %s199
      %s201 = sphi 0, %s199
      %s202 = sphi 0, %s201
      %s216 = sphi 0, %s202
      %s220 = sphi 0, %s220
      %s222 = sphi 0, %s220
      %s223 = sphi 0, %s222
      %s237 = sphi 0, %s223
      %s241 = sphi 0, %s241
      %s243 = sphi 0, %s241
      %s244 = sphi 0, %s243
      %s258 = sphi 0, %s244
      %s262 = sphi 0, %s262
      %s264 = sphi 0, %s262
      %s265 = sphi 0, %s264
      %s279 = sphi 0, %s265
      %s283 = sphi 0, %s283
      %s285 = sphi 0, %s283
      %s286 = sphi 0, %s285
      %s300 = sphi 0, %s286
      %s304 = sphi 0, %s304
      %s306 = sphi 0, %s304
      %s307 = sphi 0, %s306
      %s321 = sphi 0, %s307
      %s325 = sphi 0, %s325
      %s327 = sphi 0, %s325
      %s328 = sphi 0, %s327
      %s342 = sphi 0, %s328
      %s346 = sphi 0, %s346
      %s348 = sphi 0, %s346
      %s349 = sphi 0, %s348
      %s363 = sphi 0, %s349
      %s367 = sphi 0, %s367
      %s369 = sphi 0, %s367
      %s370 = sphi 0, %s369
      %s384 = sphi 0, %s370
      %s388 = sphi 0, %s388
      %s390 = sphi 0, %s388
      %s391 = sphi 0, %s390
      %s405 = sphi 0, %s391
      %s409 = sphi 0, %s409
      %s411 = sphi 0, %s409
      %s412 = sphi 0, %s411
      %s426 = sphi 0, %s412
      %s430 = sphi 0, %s430
      %s432 = sphi 0, %s430
      %s433 = sphi 0, %s432
      %s447 = sphi 0, %s433
      %s451 = sphi 0, %s451
      %s453 = sphi 0, %s451
      %s454 = sphi 0, %s453
      %s468 = sphi 0, %s454
      %s474 = sphi 0, %s476
      %s477 = sphi 0, %s474
      %s478 = sphi 0, %s477
      %s494 = sphi 0, %s478
      %s500 = sphi 0, %s502
      %s503 = sphi 0, %s500
      %s504 = sphi 0, %s503
      %s520 = sphi 0, %s504
    $region4: #{roberta_multilabel_forward.1} parent=1 // loop_header_branch
      %37 = sbr.rel (%p35) target = $region8
    $region5: #{roberta_multilabel_forward.1} parent=1 // loop_body
      %s39 = ssub.s32 %s34, 1
      %s40 = ssub.s32 %s34, 2
      %s41 = sadd.s32 %s34, 1
      %s42 = ssub.s32 %s34, %s41
      %p43 = scmp.eq.s32.totalorder %s42, 0
      %s45 = sadd.s32 %s44, 1
      %s46 = scalar_select %p43, %s44, %s45
      %p49 = pneg %p43
      %p50 = scmp.eq.s32.totalorder %s34, 1
      %p51 = por %p49, %p50
      %p52 = scmp.ne.s32.totalorder %s44, %s47
      %p53 = scmp.eq.s32.totalorder %s34, 0
      %p54 = por %p52, %p53
      %p55 = scmp.ne.s32.totalorder %s44, %s47
      %p56 = scmp.eq.s32.totalorder %s39, 1
      %p57 = por %p55, %p56
      %p58 = scmp.ne.s32.totalorder %s47, %s48
      %p59 = scmp.eq.s32.totalorder %s39, 0
      %p60 = por %p58, %p59
      %p61 = scmp.ne.s32.totalorder %s47, %s48
      %p62 = scmp.eq.s32.totalorder %s40, 1
      %p63 = por %p61, %p62
      %p65 = scmp.ne.s32.totalorder %s48, %s64
      %p66 = scmp.eq.s32.totalorder %s40, 0
      %p67 = por %p65, %p66
      %s68 = ssub.s32 %s34, %s41
      %p69 = scmp.eq.s32.totalorder %s68, 0
      %s71 = sadd.s32 %s70, 1
      %s72 = scalar_select %p69, %s70, %s71
      %p75 = pneg %p69
      %p76 = scmp.eq.s32.totalorder %s34, 1
      %p77 = por %p75, %p76
      %p78 = scmp.ne.s32.totalorder %s70, %s73
      %p79 = scmp.eq.s32.totalorder %s34, 0
      %p80 = por %p78, %p79
      %p81 = scmp.ne.s32.totalorder %s70, %s73
      %p82 = scmp.eq.s32.totalorder %s39, 1
      %p83 = por %p81, %p82
      %p84 = scmp.ne.s32.totalorder %s73, %s74
      %p85 = scmp.eq.s32.totalorder %s39, 0
      %p86 = por %p84, %p85
      %p87 = scmp.ne.s32.totalorder %s73, %s74
      %p88 = scmp.eq.s32.totalorder %s40, 1
      %p89 = por %p87, %p88
      %p91 = scmp.ne.s32.totalorder %s74, %s90
      %p92 = scmp.eq.s32.totalorder %s40, 0
      %p93 = por %p91, %p92
      %s95 = sadd.s32 %s94, 1
      %p98 = scmp.eq.s32.totalorder %s34, 1
      %p99 = scmp.ne.s32.totalorder %s94, %s96
      %p100 = scmp.eq.s32.totalorder %s34, 0
      %p101 = por %p99, %p100
      %p102 = scmp.ne.s32.totalorder %s94, %s96
      %p103 = scmp.eq.s32.totalorder %s39, 1
      %p104 = por %p102, %p103
      %p105 = scmp.ne.s32.totalorder %s96, %s97
      %p106 = scmp.eq.s32.totalorder %s39, 0
      %p107 = por %p105, %p106
      %p108 = scmp.ne.s32.totalorder %s96, %s97
      %p109 = scmp.eq.s32.totalorder %s40, 1
      %p110 = por %p108, %p109
      %p112 = scmp.ne.s32.totalorder %s97, %s111
      %p113 = scmp.eq.s32.totalorder %s40, 0
      %p114 = por %p112, %p113
      %s116 = sadd.s32 %s115, 1
      %p119 = scmp.eq.s32.totalorder %s34, 1
      %p120 = scmp.ne.s32.totalorder %s115, %s117
      %p121 = scmp.eq.s32.totalorder %s34, 0
      %p122 = por %p120, %p121
      %p123 = scmp.ne.s32.totalorder %s115, %s117
      %p124 = scmp.eq.s32.totalorder %s39, 1
      %p125 = por %p123, %p124
      %p126 = scmp.ne.s32.totalorder %s117, %s118
      %p127 = scmp.eq.s32.totalorder %s39, 0
      %p128 = por %p126, %p127
      %p129 = scmp.ne.s32.totalorder %s117, %s118
      %p130 = scmp.eq.s32.totalorder %s40, 1
      %p131 = por %p129, %p130
      %p133 = scmp.ne.s32.totalorder %s118, %s132
      %p134 = scmp.eq.s32.totalorder %s40, 0
      %p135 = por %p133, %p134
      %s137 = sadd.s32 %s136, 1
      %p140 = scmp.eq.s32.totalorder %s34, 1
      %p141 = scmp.ne.s32.totalorder %s136, %s138
      %p142 = scmp.eq.s32.totalorder %s34, 0
      %p143 = por %p141, %p142
      %p144 = scmp.ne.s32.totalorder %s136, %s138
      %p145 = scmp.eq.s32.totalorder %s39, 1
      %p146 = por %p144, %p145
      %p147 = scmp.ne.s32.totalorder %s138, %s139
      %p148 = scmp.eq.s32.totalorder %s39, 0
      %p149 = por %p147, %p148
      %p150 = scmp.ne.s32.totalorder %s138, %s139
      %p151 = scmp.eq.s32.totalorder %s40, 1
      %p152 = por %p150, %p151
      %p154 = scmp.ne.s32.totalorder %s139, %s153
      %p155 = scmp.eq.s32.totalorder %s40, 0
      %p156 = por %p154, %p155
      %s158 = sadd.s32 %s157, 1
      %p161 = scmp.eq.s32.totalorder %s34, 1
      %p162 = scmp.ne.s32.totalorder %s157, %s159
      %p163 = scmp.eq.s32.totalorder %s34, 0
      %p164 = por %p162, %p163
      %p165 = scmp.ne.s32.totalorder %s157, %s159
      %p166 = scmp.eq.s32.totalorder %s39, 1
      %p167 = por %p165, %p166
      %p168 = scmp.ne.s32.totalorder %s159, %s160
      %p169 = scmp.eq.s32.totalorder %s39, 0
      %p170 = por %p168, %p169
      %p171 = scmp.ne.s32.totalorder %s159, %s160
      %p172 = scmp.eq.s32.totalorder %s40, 1
      %p173 = por %p171, %p172
      %p175 = scmp.ne.s32.totalorder %s160, %s174
      %p176 = scmp.eq.s32.totalorder %s40, 0
      %p177 = por %p175, %p176
      %s179 = sadd.s32 %s178, 1
      %p182 = scmp.eq.s32.totalorder %s34, 1
      %p183 = scmp.ne.s32.totalorder %s178, %s180
      %p184 = scmp.eq.s32.totalorder %s34, 0
      %p185 = por %p183, %p184
      %p186 = scmp.ne.s32.totalorder %s178, %s180
      %p187 = scmp.eq.s32.totalorder %s39, 1
      %p188 = por %p186, %p187
      %p189 = scmp.ne.s32.totalorder %s180, %s181
      %p190 = scmp.eq.s32.totalorder %s39, 0
      %p191 = por %p189, %p190
      %p192 = scmp.ne.s32.totalorder %s180, %s181
      %p193 = scmp.eq.s32.totalorder %s40, 1
      %p194 = por %p192, %p193
      %p196 = scmp.ne.s32.totalorder %s181, %s195
      %p197 = scmp.eq.s32.totalorder %s40, 0
      %p198 = por %p196, %p197
      %s200 = sadd.s32 %s199, 1
      %p203 = scmp.eq.s32.totalorder %s34, 1
      %p204 = scmp.ne.s32.totalorder %s199, %s201
      %p205 = scmp.eq.s32.totalorder %s34, 0
      %p206 = por %p204, %p205
      %p207 = scmp.ne.s32.totalorder %s199, %s201
      %p208 = scmp.eq.s32.totalorder %s39, 1
      %p209 = por %p207, %p208
      %p210 = scmp.ne.s32.totalorder %s201, %s202
      %p211 = scmp.eq.s32.totalorder %s39, 0
      %p212 = por %p210, %p211
      %p213 = scmp.ne.s32.totalorder %s201, %s202
      %p214 = scmp.eq.s32.totalorder %s40, 1
      %p215 = por %p213, %p214
      %p217 = scmp.ne.s32.totalorder %s202, %s216
      %p218 = scmp.eq.s32.totalorder %s40, 0
      %p219 = por %p217, %p218
      %s221 = sadd.s32 %s220, 1
      %p224 = scmp.eq.s32.totalorder %s34, 1
      %p225 = scmp.ne.s32.totalorder %s220, %s222
      %p226 = scmp.eq.s32.totalorder %s34, 0
      %p227 = por %p225, %p226
      %p228 = scmp.ne.s32.totalorder %s220, %s222
      %p229 = scmp.eq.s32.totalorder %s39, 1
      %p230 = por %p228, %p229
      %p231 = scmp.ne.s32.totalorder %s222, %s223
      %p232 = scmp.eq.s32.totalorder %s39, 0
      %p233 = por %p231, %p232
      %p234 = scmp.ne.s32.totalorder %s222, %s223
      %p235 = scmp.eq.s32.totalorder %s40, 1
      %p236 = por %p234, %p235
      %p238 = scmp.ne.s32.totalorder %s223, %s237
      %p239 = scmp.eq.s32.totalorder %s40, 0
      %p240 = por %p238, %p239
      %s242 = sadd.s32 %s241, 1
      %p245 = scmp.eq.s32.totalorder %s34, 1
      %p246 = scmp.ne.s32.totalorder %s241, %s243
      %p247 = scmp.eq.s32.totalorder %s34, 0
      %p248 = por %p246, %p247
      %p249 = scmp.ne.s32.totalorder %s241, %s243
      %p250 = scmp.eq.s32.totalorder %s39, 1
      %p251 = por %p249, %p250
      %p252 = scmp.ne.s32.totalorder %s243, %s244
      %p253 = scmp.eq.s32.totalorder %s39, 0
      %p254 = por %p252, %p253
      %p255 = scmp.ne.s32.totalorder %s243, %s244
      %p256 = scmp.eq.s32.totalorder %s40, 1
      %p257 = por %p255, %p256
      %p259 = scmp.ne.s32.totalorder %s244, %s258
      %p260 = scmp.eq.s32.totalorder %s40, 0
      %p261 = por %p259, %p260
      %s263 = sadd.s32 %s262, 1
      %p266 = scmp.eq.s32.totalorder %s34, 1
      %p267 = scmp.ne.s32.totalorder %s262, %s264
      %p268 = scmp.eq.s32.totalorder %s34, 0
      %p269 = por %p267, %p268
      %p270 = scmp.ne.s32.totalorder %s262, %s264
      %p271 = scmp.eq.s32.totalorder %s39, 1
      %p272 = por %p270, %p271
      %p273 = scmp.ne.s32.totalorder %s264, %s265
      %p274 = scmp.eq.s32.totalorder %s39, 0
      %p275 = por %p273, %p274
      %p276 = scmp.ne.s32.totalorder %s264, %s265
      %p277 = scmp.eq.s32.totalorder %s40, 1
      %p278 = por %p276, %p277
      %p280 = scmp.ne.s32.totalorder %s265, %s279
      %p281 = scmp.eq.s32.totalorder %s40, 0
      %p282 = por %p280, %p281
      %s284 = sadd.s32 %s283, 1
      %p287 = scmp.eq.s32.totalorder %s34, 1
      %p288 = scmp.ne.s32.totalorder %s283, %s285
      %p289 = scmp.eq.s32.totalorder %s34, 0
      %p290 = por %p288, %p289
      %p291 = scmp.ne.s32.totalorder %s283, %s285
      %p292 = scmp.eq.s32.totalorder %s39, 1
      %p293 = por %p291, %p292
      %p294 = scmp.ne.s32.totalorder %s285, %s286
      %p295 = scmp.eq.s32.totalorder %s39, 0
      %p296 = por %p294, %p295
      %p297 = scmp.ne.s32.totalorder %s285, %s286
      %p298 = scmp.eq.s32.totalorder %s40, 1
      %p299 = por %p297, %p298
      %p301 = scmp.ne.s32.totalorder %s286, %s300
      %p302 = scmp.eq.s32.totalorder %s40, 0
      %p303 = por %p301, %p302
      %s305 = sadd.s32 %s304, 1
      %p308 = scmp.eq.s32.totalorder %s34, 1
      %p309 = scmp.ne.s32.totalorder %s304, %s306
      %p310 = scmp.eq.s32.totalorder %s34, 0
      %p311 = por %p309, %p310
      %p312 = scmp.ne.s32.totalorder %s304, %s306
      %p313 = scmp.eq.s32.totalorder %s39, 1
      %p314 = por %p312, %p313
      %p315 = scmp.ne.s32.totalorder %s306, %s307
      %p316 = scmp.eq.s32.totalorder %s39, 0
      %p317 = por %p315, %p316
      %p318 = scmp.ne.s32.totalorder %s306, %s307
      %p319 = scmp.eq.s32.totalorder %s40, 1
      %p320 = por %p318, %p319
      %p322 = scmp.ne.s32.totalorder %s307, %s321
      %p323 = scmp.eq.s32.totalorder %s40, 0
      %p324 = por %p322, %p323
      %s326 = sadd.s32 %s325, 1
      %p329 = scmp.eq.s32.totalorder %s34, 1
      %p330 = scmp.ne.s32.totalorder %s325, %s327
      %p331 = scmp.eq.s32.totalorder %s34, 0
      %p332 = por %p330, %p331
      %p333 = scmp.ne.s32.totalorder %s325, %s327
      %p334 = scmp.eq.s32.totalorder %s39, 1
      %p335 = por %p333, %p334
      %p336 = scmp.ne.s32.totalorder %s327, %s328
      %p337 = scmp.eq.s32.totalorder %s39, 0
      %p338 = por %p336, %p337
      %p339 = scmp.ne.s32.totalorder %s327, %s328
      %p340 = scmp.eq.s32.totalorder %s40, 1
      %p341 = por %p339, %p340
      %p343 = scmp.ne.s32.totalorder %s328, %s342
      %p344 = scmp.eq.s32.totalorder %s40, 0
      %p345 = por %p343, %p344
      %s347 = sadd.s32 %s346, 1
      %p350 = scmp.eq.s32.totalorder %s34, 1
      %p351 = scmp.ne.s32.totalorder %s346, %s348
      %p352 = scmp.eq.s32.totalorder %s34, 0
      %p353 = por %p351, %p352
      %p354 = scmp.ne.s32.totalorder %s346, %s348
      %p355 = scmp.eq.s32.totalorder %s39, 1
      %p356 = por %p354, %p355
      %p357 = scmp.ne.s32.totalorder %s348, %s349
      %p358 = scmp.eq.s32.totalorder %s39, 0
      %p359 = por %p357, %p358
      %p360 = scmp.ne.s32.totalorder %s348, %s349
      %p361 = scmp.eq.s32.totalorder %s40, 1
      %p362 = por %p360, %p361
      %p364 = scmp.ne.s32.totalorder %s349, %s363
      %p365 = scmp.eq.s32.totalorder %s40, 0
      %p366 = por %p364, %p365
      %s368 = sadd.s32 %s367, 1
      %p371 = scmp.eq.s32.totalorder %s34, 1
      %p372 = scmp.ne.s32.totalorder %s367, %s369
      %p373 = scmp.eq.s32.totalorder %s34, 0
      %p374 = por %p372, %p373
      %p375 = scmp.ne.s32.totalorder %s367, %s369
      %p376 = scmp.eq.s32.totalorder %s39, 1
      %p377 = por %p375, %p376
      %p378 = scmp.ne.s32.totalorder %s369, %s370
      %p379 = scmp.eq.s32.totalorder %s39, 0
      %p380 = por %p378, %p379
      %p381 = scmp.ne.s32.totalorder %s369, %s370
      %p382 = scmp.eq.s32.totalorder %s40, 1
      %p383 = por %p381, %p382
      %p385 = scmp.ne.s32.totalorder %s370, %s384
      %p386 = scmp.eq.s32.totalorder %s40, 0
      %p387 = por %p385, %p386
      %s389 = sadd.s32 %s388, 1
      %p392 = scmp.eq.s32.totalorder %s34, 1
      %p393 = scmp.ne.s32.totalorder %s388, %s390
      %p394 = scmp.eq.s32.totalorder %s34, 0
      %p395 = por %p393, %p394
      %p396 = scmp.ne.s32.totalorder %s388, %s390
      %p397 = scmp.eq.s32.totalorder %s39, 1
      %p398 = por %p396, %p397
      %p399 = scmp.ne.s32.totalorder %s390, %s391
      %p400 = scmp.eq.s32.totalorder %s39, 0
      %p401 = por %p399, %p400
      %p402 = scmp.ne.s32.totalorder %s390, %s391
      %p403 = scmp.eq.s32.totalorder %s40, 1
      %p404 = por %p402, %p403
      %p406 = scmp.ne.s32.totalorder %s391, %s405
      %p407 = scmp.eq.s32.totalorder %s40, 0
      %p408 = por %p406, %p407
      %s410 = sadd.s32 %s409, 1
      %p413 = scmp.eq.s32.totalorder %s34, 1
      %p414 = scmp.ne.s32.totalorder %s409, %s411
      %p415 = scmp.eq.s32.totalorder %s34, 0
      %p416 = por %p414, %p415
      %p417 = scmp.ne.s32.totalorder %s409, %s411
      %p418 = scmp.eq.s32.totalorder %s39, 1
      %p419 = por %p417, %p418
      %p420 = scmp.ne.s32.totalorder %s411, %s412
      %p421 = scmp.eq.s32.totalorder %s39, 0
      %p422 = por %p420, %p421
      %p423 = scmp.ne.s32.totalorder %s411, %s412
      %p424 = scmp.eq.s32.totalorder %s40, 1
      %p425 = por %p423, %p424
      %p427 = scmp.ne.s32.totalorder %s412, %s426
      %p428 = scmp.eq.s32.totalorder %s40, 0
      %p429 = por %p427, %p428
      %s431 = sadd.s32 %s430, 1
      %p434 = scmp.eq.s32.totalorder %s34, 1
      %p435 = scmp.ne.s32.totalorder %s430, %s432
      %p436 = scmp.eq.s32.totalorder %s34, 0
      %p437 = por %p435, %p436
      %p438 = scmp.ne.s32.totalorder %s430, %s432
      %p439 = scmp.eq.s32.totalorder %s39, 1
      %p440 = por %p438, %p439
      %p441 = scmp.ne.s32.totalorder %s432, %s433
      %p442 = scmp.eq.s32.totalorder %s39, 0
      %p443 = por %p441, %p442
      %p444 = scmp.ne.s32.totalorder %s432, %s433
      %p445 = scmp.eq.s32.totalorder %s40, 1
      %p446 = por %p444, %p445
      %p448 = scmp.ne.s32.totalorder %s433, %s447
      %p449 = scmp.eq.s32.totalorder %s40, 0
      %p450 = por %p448, %p449
      %s452 = sadd.s32 %s451, 1
      %p455 = scmp.eq.s32.totalorder %s34, 1
      %p456 = scmp.ne.s32.totalorder %s451, %s453
      %p457 = scmp.eq.s32.totalorder %s34, 0
      %p458 = por %p456, %p457
      %p459 = scmp.ne.s32.totalorder %s451, %s453
      %p460 = scmp.eq.s32.totalorder %s39, 1
      %p461 = por %p459, %p460
      %p462 = scmp.ne.s32.totalorder %s453, %s454
      %p463 = scmp.eq.s32.totalorder %s39, 0
      %p464 = por %p462, %p463
      %p465 = scmp.ne.s32.totalorder %s453, %s454
      %p466 = scmp.eq.s32.totalorder %s40, 1
      %p467 = por %p465, %p466
      %p469 = scmp.ne.s32.totalorder %s454, %s468
      %p470 = scmp.eq.s32.totalorder %s40, 0
      %p471 = por %p469, %p470
      %s472 = ssub.s32 %s34, %s41
      %p473 = scmp.eq.s32.totalorder %s472, 0
      %s475 = sadd.s32 %s474, 1
      %s476 = scalar_select %p473, %s474, %s475
      %p479 = pneg %p473
      %p480 = scmp.eq.s32.totalorder %s34, 1
      %p481 = por %p479, %p480
      %p482 = scmp.ne.s32.totalorder %s474, %s477
      %p483 = scmp.eq.s32.totalorder %s34, 0
      %p484 = por %p482, %p483
      %p485 = scmp.ne.s32.totalorder %s474, %s477
      %p486 = scmp.eq.s32.totalorder %s39, 1
      %p487 = por %p485, %p486
      %p488 = scmp.ne.s32.totalorder %s477, %s478
      %p489 = scmp.eq.s32.totalorder %s39, 0
      %p490 = por %p488, %p489
      %p491 = scmp.ne.s32.totalorder %s477, %s478
      %p492 = scmp.eq.s32.totalorder %s40, 1
      %p493 = por %p491, %p492
      %p495 = scmp.ne.s32.totalorder %s478, %s494
      %p496 = scmp.eq.s32.totalorder %s40, 0
      %p497 = por %p495, %p496
      %s498 = ssub.s32 %s34, %s41
      %p499 = scmp.eq.s32.totalorder %s498, 0
      %s501 = sadd.s32 %s500, 1
      %s502 = scalar_select %p499, %s500, %s501
      %p505 = pneg %p499
      %p506 = scmp.eq.s32.totalorder %s34, 1
      %p507 = por %p505, %p506
      %p508 = scmp.ne.s32.totalorder %s500, %s503
      %p509 = scmp.eq.s32.totalorder %s34, 0
      %p510 = por %p508, %p509
      %p511 = scmp.ne.s32.totalorder %s500, %s503
      %p512 = scmp.eq.s32.totalorder %s39, 1
      %p513 = por %p511, %p512
      %p514 = scmp.ne.s32.totalorder %s503, %s504
      %p515 = scmp.eq.s32.totalorder %s39, 0
      %p516 = por %p514, %p515
      %p517 = scmp.ne.s32.totalorder %s503, %s504
      %p518 = scmp.eq.s32.totalorder %s40, 1
      %p519 = por %p517, %p518
      %p521 = scmp.ne.s32.totalorder %s504, %s520
      %p522 = scmp.eq.s32.totalorder %s40, 0
      %p523 = por %p521, %p522
      %p524 = scmp.le.s32.totalorder 1, %s34
      %p525 = scmp.lt.s32.totalorder %s34, 3
      %p526 = pnand %p524, %p525
      %p527 = pneg %p526
      // Predicated region
      $region9: #{roberta_multilabel_forward.1} parent=5 // pred_check
        _
      $region10: #{roberta_multilabel_forward.1} parent=5 // pred_check_branch
        %529 = sbr.rel (%p526) target = $region12
      $region11: #{roberta_multilabel_forward.1} parent=5 // pred_region
        %s530 = ssub.s32 %s34, 1
        // Predicated region
        $region13: #{roberta_multilabel_forward.1} parent=11 // pred_check
          %p531 = pneg %p107
        $region14: #{roberta_multilabel_forward.1} parent=11 // pred_check_branch
          %533 = sbr.rel (%p531) target = $region16
        $region15: #{roberta_multilabel_forward.1} parent=11 // pred_region
          _
        $region16: #{roberta_multilabel_forward.1} parent=11 // pred_fallthru
          _
        // Predicated region
        $region17: #{roberta_multilabel_forward.1} parent=11 // pred_check
          %p534 = pneg %p128
        $region18: #{roberta_multilabel_forward.1} parent=11 // pred_check_branch
          %536 = sbr.rel (%p534) target = $region20
        $region19: #{roberta_multilabel_forward.1} parent=11 // pred_region
          _
        $region20: #{roberta_multilabel_forward.1} parent=11 // pred_fallthru
          _
        // Predicated region
        $region21: #{roberta_multilabel_forward.1} parent=11 // pred_check
          %p537 = pneg %p149
        $region22: #{roberta_multilabel_forward.1} parent=11 // pred_check_branch
          %539 = sbr.rel (%p537) target = $region24
        $region23: #{roberta_multilabel_forward.1} parent=11 // pred_region
          _
        $region24: #{roberta_multilabel_forward.1} parent=11 // pred_fallthru
          _
        // Predicated region
        $region25: #{roberta_multilabel_forward.1} parent=11 // pred_check
          %p540 = pneg %p170
        $region26: #{roberta_multilabel_forward.1} parent=11 // pred_check_branch
          %542 = sbr.rel (%p540) target = $region28
        $region27: #{roberta_multilabel_forward.1} parent=11 // pred_region
          _
        $region28: #{roberta_multilabel_forward.1} parent=11 // pred_fallthru
          _
        // Predicated region
        $region29: #{roberta_multilabel_forward.1} parent=11 // pred_check
          %p543 = pneg %p191
        $region30: #{roberta_multilabel_forward.1} parent=11 // pred_check_branch
          %545 = sbr.rel (%p543) target = $region32
        $region31: #{roberta_multilabel_forward.1} parent=11 // pred_region
          _
        $region32: #{roberta_multilabel_forward.1} parent=11 // pred_fallthru
          _
        // Predicated region
        $region33: #{roberta_multilabel_forward.1} parent=11 // pred_check
          %p546 = pneg %p212
        $region34: #{roberta_multilabel_forward.1} parent=11 // pred_check_branch
          %548 = sbr.rel (%p546) target = $region36
        $region35: #{roberta_multilabel_forward.1} parent=11 // pred_region
          _
        $region36: #{roberta_multilabel_forward.1} parent=11 // pred_fallthru
          _
        // Predicated region
        $region37: #{roberta_multilabel_forward.1} parent=11 // pred_check
          %p549 = pneg %p233
        $region38: #{roberta_multilabel_forward.1} parent=11 // pred_check_branch
          %551 = sbr.rel (%p549) target = $region40
        $region39: #{roberta_multilabel_forward.1} parent=11 // pred_region
          _
        $region40: #{roberta_multilabel_forward.1} parent=11 // pred_fallthru
          _
        // Predicated region
        $region41: #{roberta_multilabel_forward.1} parent=11 // pred_check
          %p552 = pneg %p254
        $region42: #{roberta_multilabel_forward.1} parent=11 // pred_check_branch
          %554 = sbr.rel (%p552) target = $region44
        $region43: #{roberta_multilabel_forward.1} parent=11 // pred_region
          _
        $region44: #{roberta_multilabel_forward.1} parent=11 // pred_fallthru
          _
        // Predicated region
        $region45: #{roberta_multilabel_forward.1} parent=11 // pred_check
          %p555 = pneg %p275
        $region46: #{roberta_multilabel_forward.1} parent=11 // pred_check_branch
          %557 = sbr.rel (%p555) target = $region48
        $region47: #{roberta_multilabel_forward.1} parent=11 // pred_region
          _
        $region48: #{roberta_multilabel_forward.1} parent=11 // pred_fallthru
          _
        // Predicated region
        $region49: #{roberta_multilabel_forward.1} parent=11 // pred_check
          %p558 = pneg %p296
        $region50: #{roberta_multilabel_forward.1} parent=11 // pred_check_branch
          %560 = sbr.rel (%p558) target = $region52
        $region51: #{roberta_multilabel_forward.1} parent=11 // pred_region
          _
        $region52: #{roberta_multilabel_forward.1} parent=11 // pred_fallthru
          _
        // Predicated region
        $region53: #{roberta_multilabel_forward.1} parent=11 // pred_check
          %p561 = pneg %p317
        $region54: #{roberta_multilabel_forward.1} parent=11 // pred_check_branch
          %563 = sbr.rel (%p561) target = $region56
        $region55: #{roberta_multilabel_forward.1} parent=11 // pred_region
          _
        $region56: #{roberta_multilabel_forward.1} parent=11 // pred_fallthru
          _
        // Predicated region
        $region57: #{roberta_multilabel_forward.1} parent=11 // pred_check
          %p564 = pneg %p338
        $region58: #{roberta_multilabel_forward.1} parent=11 // pred_check_branch
          %566 = sbr.rel (%p564) target = $region60
        $region59: #{roberta_multilabel_forward.1} parent=11 // pred_region
          _
        $region60: #{roberta_multilabel_forward.1} parent=11 // pred_fallthru
          _
        // Predicated region
        $region61: #{roberta_multilabel_forward.1} parent=11 // pred_check
          %p567 = pneg %p359
        $region62: #{roberta_multilabel_forward.1} parent=11 // pred_check_branch
          %569 = sbr.rel (%p567) target = $region64
        $region63: #{roberta_multilabel_forward.1} parent=11 // pred_region
          _
        $region64: #{roberta_multilabel_forward.1} parent=11 // pred_fallthru
          _
        // Predicated region
        $region65: #{roberta_multilabel_forward.1} parent=11 // pred_check
          %p570 = pneg %p380
        $region66: #{roberta_multilabel_forward.1} parent=11 // pred_check_branch
          %572 = sbr.rel (%p570) target = $region68
        $region67: #{roberta_multilabel_forward.1} parent=11 // pred_region
          _
        $region68: #{roberta_multilabel_forward.1} parent=11 // pred_fallthru
          _
        // Predicated region
        $region69: #{roberta_multilabel_forward.1} parent=11 // pred_check
          %p573 = pneg %p401
        $region70: #{roberta_multilabel_forward.1} parent=11 // pred_check_branch
          %575 = sbr.rel (%p573) target = $region72
        $region71: #{roberta_multilabel_forward.1} parent=11 // pred_region
          _
        $region72: #{roberta_multilabel_forward.1} parent=11 // pred_fallthru
          _
        // Predicated region
        $region73: #{roberta_multilabel_forward.1} parent=11 // pred_check
          %p576 = pneg %p422
        $region74: #{roberta_multilabel_forward.1} parent=11 // pred_check_branch
          %578 = sbr.rel (%p576) target = $region76
        $region75: #{roberta_multilabel_forward.1} parent=11 // pred_region
          _
        $region76: #{roberta_multilabel_forward.1} parent=11 // pred_fallthru
          _
        // Predicated region
        $region77: #{roberta_multilabel_forward.1} parent=11 // pred_check
          %p579 = pneg %p443
        $region78: #{roberta_multilabel_forward.1} parent=11 // pred_check_branch
          %581 = sbr.rel (%p579) target = $region80
        $region79: #{roberta_multilabel_forward.1} parent=11 // pred_region
          _
        $region80: #{roberta_multilabel_forward.1} parent=11 // pred_fallthru
          _
        // Predicated region
        $region81: #{roberta_multilabel_forward.1} parent=11 // pred_check
          %p582 = pneg %p464
        $region82: #{roberta_multilabel_forward.1} parent=11 // pred_check_branch
          %584 = sbr.rel (%p582) target = $region84
        $region83: #{roberta_multilabel_forward.1} parent=11 // pred_region
          _
        $region84: #{roberta_multilabel_forward.1} parent=11 // pred_fallthru
          _
      $region12: #{roberta_multilabel_forward.1} parent=5 // pred_fallthru
        _
      %p585 = scmp.lt.s32.totalorder %s34, 2
      // Predicated region
      $region85: #{roberta_multilabel_forward.1} parent=5 // pred_check
        %p586 = pneg %p585
      $region86: #{roberta_multilabel_forward.1} parent=5 // pred_check_branch
        %588 = sbr.rel (%p586) target = $region88
      $region87: #{roberta_multilabel_forward.1} parent=5 // pred_region
        // Predicated region
        $region89: #{roberta_multilabel_forward.1} parent=87 // pred_check
          %p589 = pneg %p54
        $region90: #{roberta_multilabel_forward.1} parent=87 // pred_check_branch
          %591 = sbr.rel (%p589) target = $region92
        $region91: #{roberta_multilabel_forward.1} parent=87 // pred_region
          %p592 = scmp.lt.s32.totalorder %s34, 1
          %s593 = scalar_select %p592, %s34, 1
          %s594 = smul.addr %s593, 8
          %s595 = scalar_lea.vmem %s0, %s594
        $region92: #{roberta_multilabel_forward.1} parent=87 // pred_fallthru
          _
        // Predicated region
        $region93: #{roberta_multilabel_forward.1} parent=87 // pred_check
          %p596 = pneg %p80
        $region94: #{roberta_multilabel_forward.1} parent=87 // pred_check_branch
          %598 = sbr.rel (%p596) target = $region96
        $region95: #{roberta_multilabel_forward.1} parent=87 // pred_region
          %p599 = scmp.lt.s32.totalorder %s34, 1
          %s600 = scalar_select %p599, %s34, 1
          %s601 = scalar_lea.vmem %s1, %s600
        $region96: #{roberta_multilabel_forward.1} parent=87 // pred_fallthru
          _
      $region88: #{roberta_multilabel_forward.1} parent=5 // pred_fallthru
        _
      %p602 = scmp.le.s32.totalorder 1, %s34
      %p603 = scmp.lt.s32.totalorder %s34, 3
      %p604 = pnand %p602, %p603
      %p605 = pneg %p604
      // Predicated region
      $region97: #{roberta_multilabel_forward.1} parent=5 // pred_check
        _
      $region98: #{roberta_multilabel_forward.1} parent=5 // pred_check_branch
        %607 = sbr.rel (%p604) target = $region100
      $region99: #{roberta_multilabel_forward.1} parent=5 // pred_region
        %s608 = ssub.s32 %s34, 1
        %p609 = scmp.lt.s32.totalorder %s39, 1
        %s610 = scalar_select %p609, %s39, 1
        %s611 = smul.addr %s610, 8
        %s612 = scalar_lea.vmem %s0, %s611
        %p613 = pneg %p60
        %p614 = pneg %p57
        %p615 = scmp.lt.s32.totalorder %s39, 1
        %s616 = scalar_select %p615, %s39, 1
        %s617 = scalar_lea.vmem %s1, %s616
        %p618 = pneg %p86
        %p619 = pneg %p83
        %p620 = pneg %p107
        %p621 = pneg %p104
        %p622 = pneg %p128
        %p623 = pneg %p125
        %p624 = pneg %p149
        %p625 = pneg %p146
        %p626 = pneg %p170
        %p627 = pneg %p167
        %p628 = pneg %p191
        %p629 = pneg %p188
        %p630 = pneg %p212
        %p631 = pneg %p209
        %p632 = pneg %p233
        %p633 = pneg %p230
        %p634 = pneg %p254
        %p635 = pneg %p251
        %p636 = pneg %p275
        %p637 = pneg %p272
        %p638 = pneg %p296
        %p639 = pneg %p293
        %p640 = pneg %p317
        %p641 = pneg %p314
        %p642 = pneg %p338
        %p643 = pneg %p335
        %p644 = pneg %p359
        %p645 = pneg %p356
        %p646 = pneg %p380
        %p647 = pneg %p377
        %p648 = pneg %p401
        %p649 = pneg %p398
        %p650 = pneg %p422
        %p651 = pneg %p419
        %p652 = pneg %p443
        %p653 = pneg %p440
        %p654 = pneg %p464
        %p655 = pneg %p461
        %p656 = pneg %p490
        %p657 = pneg %p487
        %s658 = sand.u32 %s477, 1
        %s659 = scalar_lea.sflag [#allocation3], %s658
        %s660 = sand.u32 %s477, 1
        %s661 = scalar_lea.vmem [#allocation2], %s660
        %p662 = pneg %p516
        %p663 = pneg %p513
        %s664 = sand.u32 %s503, 1
        %s665 = scalar_lea.sflag [#allocation5], %s664
        %s666 = sand.u32 %s503, 1
        %s667 = scalar_lea.vmem [#allocation4], %s666
        %p668 = scmp.lt.s32.totalorder %s39, 1
        %s669 = scalar_select %p668, %s39, 1
        %s670 = smul.addr %s669, 8
        %s671 = scalar_lea.vmem %s0, %s670
        %p672 = scmp.lt.s32.totalorder %s39, 1
        %s673 = scalar_select %p672, %s39, 1
        %s674 = scalar_lea.vmem %s1, %s673
        %v676 = vld [vmem:[%s674] sm:$0x1]
        %v677 = vld [vmem:[%s671] sm:$0xff]
        %v678 = vld [vmem:[%s2] sm:$0x1]
        %v679 = vld [vmem:[%s3] sm:$0x1]
        %vm680 = vcmask 261120
        %v681 = vsel %vm680, %v677, 0.0
        %682 = vadd.xlane.f32.xlu0 %v681
        %v683 = vpop.xlane.xlu0 %682
        %v684 = vrcp.pop 32.0
        %v685 = vmul.f32 32.0, %v684
        %v686 = vsub.f32 1.0, %v685
        %v687 = vmul.f32 %v684, %v686
        %v688 = vadd.f32 %v684, %v687
        %vm689 = vweird.f32 %v684
        %v690 = vsel %vm689, %v684, %v688
        %v691 = vmul.f32 %v683, %v690
        %v692 = vsub.f32 %v677, %v691
        %v693 = vmul.f32 %v692, %v692
        %v694 = vsel %vm680, %v693, 0.0
        %695 = vadd.xlane.f32.xlu0 %v694
        %v696 = vpop.xlane.xlu0 %695
        %v697 = vmul.f32 %v696, %v690
        %v698 = vadd.f32 %v697, 1e-05
        %v699 = vrsqrt.pop %v698
        %v700 = vmul.f32 %v699, %v698
        %v701 = vmul.f32 %v700, %v699
        %v702 = vmul.f32 0.5, %v701
        %v703 = vsub.f32 1.5, %v702
        %v704 = vmul.f32 %v699, %v703
        %vm705 = vweird.f32 %v698
        %vm706 = vweird.f32 %v699
        %vm707 = vmor %vm705, %vm706
        %v708 = vsel %vm707, %v699, %v704
        %v709 = vmul.f32 %v692, %v708
        %v711 = vperm.slane %v678, 0
        %v713 = vmul.f32 %v709, %v711
        %v715 = vperm.slane %v679, 0
        %v717 = vadd.f32 %v713, %v715
        %v718 = vpack.c.bf16 %v717, %v717
        %v719 = vld [vmem:[%s4] sm:$0xf]
        %v720 = vld [vmem:[%s4 + $0x4] sm:$0xf]
        %v721 = vld [vmem:[%s4 + $0x8] sm:$0xf]
        %v722 = vld [vmem:[%s4 + $0xc] sm:$0xf]
        %v723 = vld [vmem:[%s4 + $0x10] sm:$0xf]
        %v724 = vld [vmem:[%s4 + $0x14] sm:$0xf]
        %v725 = vld [vmem:[%s4 + $0x18] sm:$0xf]
        %v726 = vld [vmem:[%s4 + $0x1c] sm:$0xf]
        %v727 = vld [vmem:[%s4 + $0x20] sm:$0xf]
        %v728 = vld [vmem:[%s4 + $0x24] sm:$0xf]
        %v729 = vld [vmem:[%s4 + $0x28] sm:$0xf]
        %v730 = vld [vmem:[%s4 + $0x2c] sm:$0xf]
        %v731 = vld [vmem:[%s4 + $0x30] sm:$0xf]
        %v732 = vld [vmem:[%s4 + $0x34] sm:$0xf]
        %v733 = vld [vmem:[%s4 + $0x38] sm:$0xf]
        %v734 = vld [vmem:[%s4 + $0x3c] sm:$0xf]
        %v735 = vld [vmem:[%s4 + $0x40] sm:$0xf]
        %v736 = vld [vmem:[%s4 + $0x44] sm:$0xf]
        %v737 = vld [vmem:[%s4 + $0x48] sm:$0xf]
        %v738 = vld [vmem:[%s4 + $0x4c] sm:$0xf]
        %v739 = vld [vmem:[%s4 + $0x50] sm:$0xf]
        %v740 = vld [vmem:[%s4 + $0x54] sm:$0xf]
        %v741 = vld [vmem:[%s4 + $0x58] sm:$0xf]
        %v742 = vld [vmem:[%s4 + $0x5c] sm:$0xf]
        %v743 = vld [vmem:[%s5] sm:$0x1]
        %v744 = vld [vmem:[%s5 + $0x1] sm:$0x1]
        %v745 = vld [vmem:[%s5 + $0x2] sm:$0x1]
        %v746 = vld [vmem:[%s5 + $0x3] sm:$0x1]
        %v747 = vld [vmem:[%s5 + $0x4] sm:$0x1]
        %v748 = vld [vmem:[%s5 + $0x5] sm:$0x1]
        %v755 = vperm.slane %v743, 0
        %v756 = vperm.slane %v744, 0
        %v757 = vperm.slane %v745, 0
        %v758 = vperm.slane %v746, 0
        %v759 = vperm.slane %v747, 0
        %v760 = vperm.slane %v748, 0
        %v771 = vunpack.c.l.b16 %v719
        %v772 = vunpack.c.l.b16 %v720
        %v773 = vunpack.c.l.b16 %v721
        %v774 = vunpack.c.l.b16 %v722
        %v775 = vpack.c.b16 %v772, %v771
        %v776 = vpack.c.b16 %v774, %v773
        %v780 = vsel %vm680, %v718, 0
        %782 = vmatpush.bf16.msra.mxu0 0
        %783 = vmatpush.bf16.msra.mxu0 0
        %784 = vmatpush.bf16.msra.mxu0 0
        %785 = vmatpush.bf16.msra.mxu0 0
        %786 = vmatpush.bf16.msra.mxu0 0
        %787 = vmatpush.bf16.msra.mxu0 0
        %788 = vmatpush.bf16.msra.mxu0 %v776
        %789 = vmatpush.bf16.msra.mxu0 %v775
        %790 = vmatmul.bf16.gmra.mxu0 %v780
        %v791 = vpop.f32.mrf.mxu0
        %v792 = vadd.f32 %v755, %v791
        %v793 = vpop.f32.mrf.mxu0
        %794 = vdwg.mxu0
        %v799 = vunpack.c.l.b16 %v723
        %v800 = vunpack.c.l.b16 %v724
        %v801 = vunpack.c.l.b16 %v725
        %v802 = vunpack.c.l.b16 %v726
        %v803 = vpack.c.b16 %v800, %v799
        %v804 = vpack.c.b16 %v802, %v801
        %807 = vmatpush.bf16.msra.mxu0 0
        %808 = vmatpush.bf16.msra.mxu0 0
        %809 = vmatpush.bf16.msra.mxu0 0
        %810 = vmatpush.bf16.msra.mxu0 0
        %811 = vmatpush.bf16.msra.mxu0 0
        %812 = vmatpush.bf16.msra.mxu0 0
        %813 = vmatpush.bf16.msra.mxu0 %v804
        %814 = vmatpush.bf16.msra.mxu0 %v803
        %815 = vmatmul.bf16.gmra.mxu0 %v780
        %v816 = vpop.f32.mrf.mxu0
        %v817 = vadd.f32 %v756, %v816
        %v818 = vpop.f32.mrf.mxu0
        %819 = vdwg.mxu0
        %v824 = vunpack.c.l.b16 %v727
        %v825 = vunpack.c.l.b16 %v728
        %v826 = vunpack.c.l.b16 %v729
        %v827 = vunpack.c.l.b16 %v730
        %v828 = vpack.c.b16 %v825, %v824
        %v829 = vpack.c.b16 %v827, %v826
        %832 = vmatpush.bf16.msra.mxu0 0
        %833 = vmatpush.bf16.msra.mxu0 0
        %834 = vmatpush.bf16.msra.mxu0 0
        %835 = vmatpush.bf16.msra.mxu0 0
        %836 = vmatpush.bf16.msra.mxu0 0
        %837 = vmatpush.bf16.msra.mxu0 0
        %838 = vmatpush.bf16.msra.mxu0 %v829
        %839 = vmatpush.bf16.msra.mxu0 %v828
        %840 = vmatmul.bf16.gmra.mxu0 %v780
        %v841 = vpop.f32.mrf.mxu0
        %v842 = vadd.f32 %v757, %v841
        %v843 = vpop.f32.mrf.mxu0
        %844 = vdwg.mxu0
        %v849 = vunpack.c.l.b16 %v731
        %v850 = vunpack.c.l.b16 %v732
        %v851 = vunpack.c.l.b16 %v733
        %v852 = vunpack.c.l.b16 %v734
        %v853 = vpack.c.b16 %v850, %v849
        %v854 = vpack.c.b16 %v852, %v851
        %857 = vmatpush.bf16.msra.mxu0 0
        %858 = vmatpush.bf16.msra.mxu0 0
        %859 = vmatpush.bf16.msra.mxu0 0
        %860 = vmatpush.bf16.msra.mxu0 0
        %861 = vmatpush.bf16.msra.mxu0 0
        %862 = vmatpush.bf16.msra.mxu0 0
        %863 = vmatpush.bf16.msra.mxu0 %v854
        %864 = vmatpush.bf16.msra.mxu0 %v853
        %865 = vmatmul.bf16.gmra.mxu0 %v780
        %v866 = vpop.f32.mrf.mxu0
        %v867 = vadd.f32 %v758, %v866
        %v868 = vpop.f32.mrf.mxu0
        %869 = vdwg.mxu0
        %v874 = vunpack.c.l.b16 %v735
        %v875 = vunpack.c.l.b16 %v736
        %v876 = vunpack.c.l.b16 %v737
        %v877 = vunpack.c.l.b16 %v738
        %v878 = vpack.c.b16 %v875, %v874
        %v879 = vpack.c.b16 %v877, %v876
        %882 = vmatpush.bf16.msra.mxu0 0
        %883 = vmatpush.bf16.msra.mxu0 0
        %884 = vmatpush.bf16.msra.mxu0 0
        %885 = vmatpush.bf16.msra.mxu0 0
        %886 = vmatpush.bf16.msra.mxu0 0
        %887 = vmatpush.bf16.msra.mxu0 0
        %888 = vmatpush.bf16.msra.mxu0 %v879
        %889 = vmatpush.bf16.msra.mxu0 %v878
        %890 = vmatmul.bf16.gmra.mxu0 %v780
        %v891 = vpop.f32.mrf.mxu0
        %v892 = vadd.f32 %v759, %v891
        %v893 = vpop.f32.mrf.mxu0
        %894 = vdwg.mxu0
        %v899 = vunpack.c.l.b16 %v739
        %v900 = vunpack.c.l.b16 %v740
        %v901 = vunpack.c.l.b16 %v741
        %v902 = vunpack.c.l.b16 %v742
        %v903 = vpack.c.b16 %v900, %v899
        %v904 = vpack.c.b16 %v902, %v901
        %907 = vmatpush.bf16.msra.mxu0 0
        %908 = vmatpush.bf16.msra.mxu0 0
        %909 = vmatpush.bf16.msra.mxu0 0
        %910 = vmatpush.bf16.msra.mxu0 0
        %911 = vmatpush.bf16.msra.mxu0 0
        %912 = vmatpush.bf16.msra.mxu0 0
        %913 = vmatpush.bf16.msra.mxu0 %v904
        %914 = vmatpush.bf16.msra.mxu0 %v903
        %915 = vmatmul.bf16.gmra.mxu0 %v780
        %v916 = vpop.f32.mrf.mxu0
        %v917 = vadd.f32 %v760, %v916
        %v918 = vpop.f32.mrf.mxu0
        %919 = vdwg.mxu0
        %v920 = vpack.c.bf16 %v792, %v792
        %v921 = vpack.c.bf16 %v817, %v817
        %v922 = vpack.c.bf16 %v842, %v842
        %v923 = vpack.c.bf16 %v867, %v867
        %vm924 = vcmask 130048
        %v926 = vsel %vm924, %v920, 0
        %v929 = vsel %vm924, %v922, 0
        %931 = vmatpush.bf16.xpose.msra.mxu0 0
        %932 = vmatpush.bf16.xpose.msra.mxu0 0
        %933 = vmatpush.bf16.xpose.msra.mxu0 0
        %934 = vmatpush.bf16.xpose.msra.mxu0 0
        %935 = vmatpush.bf16.xpose.msra.mxu0 0
        %936 = vmatpush.bf16.xpose.msra.mxu0 0
        %937 = vmatpush.bf16.xpose.msra.mxu0 0
        %938 = vmatpush.bf16.xpose.msra.mxu0 %v929
        %939 = vmatmul.bf16.gmra.mxu0 %v926
        %v940 = vpop.f32.mrf.mxu0
        %v941 = vadd.f32 0.0, %v940
        %v942 = vpop.f32.mrf.mxu0
        %943 = vdwg.mxu0
        %v945 = vsel %vm924, %v921, 0
        %v948 = vsel %vm924, %v923, 0
        %950 = vmatpush.bf16.xpose.msra.mxu0 0
        %951 = vmatpush.bf16.xpose.msra.mxu0 0
        %952 = vmatpush.bf16.xpose.msra.mxu0 0
        %953 = vmatpush.bf16.xpose.msra.mxu0 0
        %954 = vmatpush.bf16.xpose.msra.mxu0 0
        %955 = vmatpush.bf16.xpose.msra.mxu0 0
        %956 = vmatpush.bf16.xpose.msra.mxu0 0
        %957 = vmatpush.bf16.xpose.msra.mxu0 %v948
        %958 = vmatmul.bf16.gmra.mxu0 %v945
        %v959 = vpop.f32.mrf.mxu0
        %v960 = vadd.f32 0.0, %v959
        %v961 = vpop.f32.mrf.mxu0
        %962 = vdwg.mxu0
        %v963 = vmul.f32 %v941, 0.25
        %v964 = vmul.f32 %v960, 0.25
        %v966 = vperm.slane %v676, 0
        %v968 = vadd.f32 %v963, %v966
        %v969 = vadd.f32 %v964, %v966
        %vm970 = vcmask 64512
        %v971 = vsel %vm970, %v968, -inf
        %972 = vmax.xlane.f32.xlu0 %v971
        %v973 = vpop.xlane.xlu0 %972
        %v974 = vsel %vm970, %v969, -inf
        %975 = vmax.xlane.f32.xlu0 %v974
        %v976 = vpop.xlane.xlu0 %975
        %v977 = vsub.f32 %v968, %v973
        %v978 = vsub.f32 %v969, %v976
        %v979 = vmul.f32 %v977, 1.442695
        %v980 = vpow.pop %v979
        %v981 = vmul.f32 %v978, 1.442695
        %v982 = vpow.pop %v981
        %v983 = vsel %vm970, %v980, 0.0
        %984 = vadd.xlane.f32.xlu0 %v983
        %v985 = vpop.xlane.xlu0 %984
        %v986 = vsel %vm970, %v982, 0.0
        %987 = vadd.xlane.f32.xlu0 %v986
        %v988 = vpop.xlane.xlu0 %987
        %v989 = vrcp.pop %v985
        %v990 = vrcp.pop %v988
        %v991 = vmul.f32 %v980, %v989
        %v992 = vmul.f32 %v982, %v990
        %v993 = vpack.c.bf16 %v991, %v991
        %v994 = vpack.c.bf16 %v992, %v992
        %v995 = vpack.c.bf16 %v892, %v892
        %v996 = vpack.c.bf16 %v917, %v917
        %v998 = vsel %vm970, %v993, 0
        %vm1000 = vcmask 1043456
        %v1002 = vsel %vm1000, %v995, 0
        %1004 = vmatpush.bf16.msra.mxu0 0
        %1005 = vmatpush.bf16.msra.mxu0 0
        %1006 = vmatpush.bf16.msra.mxu0 0
        %1007 = vmatpush.bf16.msra.mxu0 0
        %1008 = vmatpush.bf16.msra.mxu0 0
        %1009 = vmatpush.bf16.msra.mxu0 0
        %1010 = vmatpush.bf16.msra.mxu0 0
        %1011 = vmatpush.bf16.msra.mxu0 %v1002
        %1012 = vmatmul.bf16.gmra.mxu0 %v998
        %v1013 = vpop.f32.mrf.mxu0
        %v1014 = vadd.f32 0.0, %v1013
        %v1015 = vpop.f32.mrf.mxu0
        %1016 = vdwg.mxu0
        %v1018 = vsel %vm970, %v994, 0
        %v1021 = vsel %vm1000, %v996, 0
        %1023 = vmatpush.bf16.msra.mxu0 0
        %1024 = vmatpush.bf16.msra.mxu0 0
        %1025 = vmatpush.bf16.msra.mxu0 0
        %1026 = vmatpush.bf16.msra.mxu0 0
        %1027 = vmatpush.bf16.msra.mxu0 0
        %1028 = vmatpush.bf16.msra.mxu0 0
        %1029 = vmatpush.bf16.msra.mxu0 0
        %1030 = vmatpush.bf16.msra.mxu0 %v1021
        %1031 = vmatmul.bf16.gmra.mxu0 %v1018
        %v1032 = vpop.f32.mrf.mxu0
        %v1033 = vadd.f32 0.0, %v1032
        %v1034 = vpop.f32.mrf.mxu0
        %1035 = vdwg.mxu0
        %v1036 = vpack.c.bf16 %v1014, %v1014
        %v1037 = vpack.c.bf16 %v1033, %v1033
        %v1038 = vld [vmem:[%s6] sm:$0xf]
        %v1039 = vld [vmem:[%s6 + $0x4] sm:$0xf]
        %v1040 = vld [vmem:[%s6 + $0x8] sm:$0xf]
        %v1041 = vld [vmem:[%s6 + $0xc] sm:$0xf]
        %v1044 = vunpack.c.l.b16 %v1038
        %v1045 = vunpack.c.l.b16 %v1039
        %v1046 = vpack.c.b16 %v1045, %v1044
        %v1049 = vsel %vm924, %v1036, 0
        %1051 = vmatpush.bf16.msra.mxu0 0
        %1052 = vmatpush.bf16.msra.mxu0 0
        %1053 = vmatpush.bf16.msra.mxu0 0
        %1054 = vmatpush.bf16.msra.mxu0 0
        %1055 = vmatpush.bf16.msra.mxu0 0
        %1056 = vmatpush.bf16.msra.mxu0 0
        %1057 = vmatpush.bf16.msra.mxu0 0
        %1058 = vmatpush.bf16.msra.mxu0 %v1046
        %1059 = vmatmul.bf16.gmra.mxu0 %v1049
        %v1060 = vpop.f32.mrf.mxu0
        %v1061 = vadd.f32 0.0, %v1060
        %v1062 = vpop.f32.mrf.mxu0
        %1063 = vdwg.mxu0
        %v1066 = vunpack.c.l.b16 %v1040
        %v1067 = vunpack.c.l.b16 %v1041
        %v1068 = vpack.c.b16 %v1067, %v1066
        %v1071 = vsel %vm924, %v1037, 0
        %1073 = vmatpush.bf16.msra.mxu0 0
        %1074 = vmatpush.bf16.msra.mxu0 0
        %1075 = vmatpush.bf16.msra.mxu0 0
        %1076 = vmatpush.bf16.msra.mxu0 0
        %1077 = vmatpush.bf16.msra.mxu0 0
        %1078 = vmatpush.bf16.msra.mxu0 0
        %1079 = vmatpush.bf16.msra.mxu0 0
        %1080 = vmatpush.bf16.msra.mxu0 %v1068
        %1081 = vmatmul.bf16.gmra.mxu0 %v1071
        %v1082 = vpop.f32.mrf.mxu0
        %v1083 = vadd.f32 0.0, %v1082
        %v1084 = vpop.f32.mrf.mxu0
        %1085 = vdwg.mxu0
        %v1086 = vsel %vm680, %v1061, 0.0
        %v1087 = vsel %vm680, %v1083, 0.0
        %v1088 = vadd.f32 %v1086, %v1087
        %v1089 = vld [vmem:[%s7] sm:$0x1]
        %v1091 = vperm.slane %v1089, 0
        %v1093 = vadd.f32 %v1088, %v1091
        %v1094 = vunpack.c.l.bf16 %v718
        %v1095 = vadd.f32 %v1093, %v1094
        %v1096 = vld [vmem:[%s8] sm:$0x1]
        %v1097 = vld [vmem:[%s9] sm:$0x1]
        %v1098 = vsel %vm680, %v1095, 0.0
        %1099 = vadd.xlane.f32.xlu0 %v1098
        %v1100 = vpop.xlane.xlu0 %1099
        %v1101 = vmul.f32 %v1100, %v690
        %v1102 = vsub.f32 %v1095, %v1101
        %v1103 = vmul.f32 %v1102, %v1102
        %v1104 = vsel %vm680, %v1103, 0.0
        %1105 = vadd.xlane.f32.xlu0 %v1104
        %v1106 = vpop.xlane.xlu0 %1105
        %v1107 = vmul.f32 %v1106, %v690
        %v1108 = vadd.f32 %v1107, 1e-05
        %v1109 = vrsqrt.pop %v1108
        %v1110 = vmul.f32 %v1109, %v1108
        %v1111 = vmul.f32 %v1110, %v1109
        %v1112 = vmul.f32 0.5, %v1111
        %v1113 = vsub.f32 1.5, %v1112
        %v1114 = vmul.f32 %v1109, %v1113
        %vm1115 = vweird.f32 %v1108
        %vm1116 = vweird.f32 %v1109
        %vm1117 = vmor %vm1115, %vm1116
        %v1118 = vsel %vm1117, %v1109, %v1114
        %v1119 = vmul.f32 %v1102, %v1118
        %v1121 = vperm.slane %v1096, 0
        %v1123 = vmul.f32 %v1119, %v1121
        %v1125 = vperm.slane %v1097, 0
        %v1127 = vadd.f32 %v1123, %v1125
        %v1128 = vpack.c.bf16 %v1127, %v1127
        %v1129 = vld [vmem:[%s10] sm:$0xf]
        %v1130 = vld [vmem:[%s10 + $0x4] sm:$0xf]
        %v1131 = vld [vmem:[%s10 + $0x8] sm:$0xf]
        %v1132 = vld [vmem:[%s10 + $0xc] sm:$0xf]
        %v1133 = vld [vmem:[%s11] sm:$0x1]
        %v1135 = vperm.slane %v1133, 0
        %v1141 = vunpack.c.l.b16 %v1129
        %v1142 = vunpack.c.l.b16 %v1130
        %v1143 = vunpack.c.l.b16 %v1131
        %v1144 = vunpack.c.l.b16 %v1132
        %v1145 = vpack.c.b16 %v1142, %v1141
        %v1146 = vpack.c.b16 %v1144, %v1143
        %v1150 = vsel %vm680, %v1128, 0
        %1152 = vmatpush.bf16.msra.mxu0 0
        %1153 = vmatpush.bf16.msra.mxu0 0
        %1154 = vmatpush.bf16.msra.mxu0 0
        %1155 = vmatpush.bf16.msra.mxu0 0
        %1156 = vmatpush.bf16.msra.mxu0 0
        %1157 = vmatpush.bf16.msra.mxu0 0
        %1158 = vmatpush.bf16.msra.mxu0 %v1146
        %1159 = vmatpush.bf16.msra.mxu0 %v1145
        %1160 = vmatmul.bf16.gmra.mxu0 %v1150
        %v1161 = vpop.f32.mrf.mxu0
        %v1162 = vadd.f32 %v1135, %v1161
        %v1163 = vpop.f32.mrf.mxu0
        %1164 = vdwg.mxu0
        %v1165 = vmul.f32 %v1162, %v1162
        %v1166 = vmul.f32 %v1162, %v1165
        %v1167 = vmul.f32 %v1166, 0.044715
        %v1168 = vadd.f32 %v1162, %v1167
        %v1169 = vmul.f32 %v1168, 0.7978846
        %v1170 = vtanh.pop %v1169
        %v1171 = vadd.f32 %v1170, 1.0
        %v1172 = vmul.f32 %v1171, 0.5
        %v1173 = vmul.f32 %v1162, %v1172
        %v1174 = vpack.c.bf16 %v1173, %v1173
        %v1175 = vld [vmem:[%s12] sm:$0xf]
        %v1176 = vld [vmem:[%s12 + $0x4] sm:$0xf]
        %v1177 = vld [vmem:[%s12 + $0x8] sm:$0xf]
        %v1178 = vld [vmem:[%s12 + $0xc] sm:$0xf]
        %v1179 = vld [vmem:[%s12 + $0x10] sm:$0xf]
        %v1180 = vld [vmem:[%s12 + $0x14] sm:$0xf]
        %v1181 = vld [vmem:[%s12 + $0x18] sm:$0xf]
        %v1182 = vld [vmem:[%s12 + $0x1c] sm:$0xf]
        %v1183 = vld [vmem:[%s13] sm:$0x1]
        %v1185 = vperm.slane %v1183, 0
        %v1195 = vunpack.c.l.b16 %v1175
        %v1196 = vunpack.c.l.b16 %v1176
        %v1197 = vunpack.c.l.b16 %v1177
        %v1198 = vunpack.c.l.b16 %v1178
        %v1199 = vunpack.c.l.b16 %v1179
        %v1200 = vunpack.c.l.b16 %v1180
        %v1201 = vunpack.c.l.b16 %v1181
        %v1202 = vunpack.c.l.b16 %v1182
        %v1203 = vpack.c.b16 %v1196, %v1195
        %v1204 = vpack.c.b16 %v1198, %v1197
        %v1205 = vpack.c.b16 %v1200, %v1199
        %v1206 = vpack.c.b16 %v1202, %v1201
        %vm1211 = vcmask 523264
        %v1213 = vsel %vm1211, %v1174, 0
        %1215 = vmatpush.bf16.msra.mxu0 0
        %1216 = vmatpush.bf16.msra.mxu0 0
        %1217 = vmatpush.bf16.msra.mxu0 0
        %1218 = vmatpush.bf16.msra.mxu0 0
        %1219 = vmatpush.bf16.msra.mxu0 %v1206
        %1220 = vmatpush.bf16.msra.mxu0 %v1205
        %1221 = vmatpush.bf16.msra.mxu0 %v1204
        %1222 = vmatpush.bf16.msra.mxu0 %v1203
        %1223 = vmatmul.bf16.gmra.mxu0 %v1213
        %v1224 = vpop.f32.mrf.mxu0
        %v1225 = vadd.f32 %v1185, %v1224
        %v1226 = vpop.f32.mrf.mxu0
        %1227 = vdwg.mxu0
        %v1228 = vunpack.c.l.bf16 %v1128
        %v1229 = vadd.f32 %v1225, %v1228
        %v1230 = vld [vmem:[%s14] sm:$0x1]
        %v1231 = vld [vmem:[%s15] sm:$0x1]
        %v1232 = vsel %vm680, %v1229, 0.0
        %1233 = vadd.xlane.f32.xlu0 %v1232
        %v1234 = vpop.xlane.xlu0 %1233
        %v1235 = vmul.f32 %v1234, %v690
        %v1236 = vsub.f32 %v1229, %v1235
        %v1237 = vmul.f32 %v1236, %v1236
        %v1238 = vsel %vm680, %v1237, 0.0
        %1239 = vadd.xlane.f32.xlu0 %v1238
        %v1240 = vpop.xlane.xlu0 %1239
        %v1241 = vmul.f32 %v1240, %v690
        %v1242 = vadd.f32 %v1241, 1e-05
        %v1243 = vrsqrt.pop %v1242
        %v1244 = vmul.f32 %v1243, %v1242
        %v1245 = vmul.f32 %v1244, %v1243
        %v1246 = vmul.f32 0.5, %v1245
        %v1247 = vsub.f32 1.5, %v1246
        %v1248 = vmul.f32 %v1243, %v1247
        %vm1249 = vweird.f32 %v1242
        %vm1250 = vweird.f32 %v1243
        %vm1251 = vmor %vm1249, %vm1250
        %v1252 = vsel %vm1251, %v1243, %v1248
        %v1253 = vmul.f32 %v1236, %v1252
        %v1255 = vperm.slane %v1230, 0
        %v1257 = vmul.f32 %v1253, %v1255
        %v1259 = vperm.slane %v1231, 0
        %v1261 = vadd.f32 %v1257, %v1259
        %v1262 = vpack.c.bf16 %v1261, %v1261
        %s1263 = scalar_lea.vmem %s4, 96
        %v1264 = vld [vmem:[%s1263] sm:$0xf]
        %v1265 = vld [vmem:[%s1263 + $0x4] sm:$0xf]
        %v1266 = vld [vmem:[%s1263 + $0x8] sm:$0xf]
        %v1267 = vld [vmem:[%s1263 + $0xc] sm:$0xf]
        %v1268 = vld [vmem:[%s1263 + $0x10] sm:$0xf]
        %v1269 = vld [vmem:[%s1263 + $0x14] sm:$0xf]
        %v1270 = vld [vmem:[%s1263 + $0x18] sm:$0xf]
        %v1271 = vld [vmem:[%s1263 + $0x1c] sm:$0xf]
        %v1272 = vld [vmem:[%s1263 + $0x20] sm:$0xf]
        %v1273 = vld [vmem:[%s1263 + $0x24] sm:$0xf]
        %v1274 = vld [vmem:[%s1263 + $0x28] sm:$0xf]
        %v1275 = vld [vmem:[%s1263 + $0x2c] sm:$0xf]
        %v1276 = vld [vmem:[%s1263 + $0x30] sm:$0xf]
        %v1277 = vld [vmem:[%s1263 + $0x34] sm:$0xf]
        %v1278 = vld [vmem:[%s1263 + $0x38] sm:$0xf]
        %v1279 = vld [vmem:[%s1263 + $0x3c] sm:$0xf]
        %v1280 = vld [vmem:[%s1263 + $0x40] sm:$0xf]
        %v1281 = vld [vmem:[%s1263 + $0x44] sm:$0xf]
        %v1282 = vld [vmem:[%s1263 + $0x48] sm:$0xf]
        %v1283 = vld [vmem:[%s1263 + $0x4c] sm:$0xf]
        %v1284 = vld [vmem:[%s1263 + $0x50] sm:$0xf]
        %v1285 = vld [vmem:[%s1263 + $0x54] sm:$0xf]
        %v1286 = vld [vmem:[%s1263 + $0x58] sm:$0xf]
        %v1287 = vld [vmem:[%s1263 + $0x5c] sm:$0xf]
        %s1288 = scalar_lea.vmem %s5, 6
        %v1289 = vld [vmem:[%s1288] sm:$0x1]
        %v1290 = vld [vmem:[%s1288 + $0x1] sm:$0x1]
        %v1291 = vld [vmem:[%s1288 + $0x2] sm:$0x1]
        %v1292 = vld [vmem:[%s1288 + $0x3] sm:$0x1]
        %v1293 = vld [vmem:[%s1288 + $0x4] sm:$0x1]
        %v1294 = vld [vmem:[%s1288 + $0x5] sm:$0x1]
        %v1301 = vperm.slane %v1289, 0
        %v1302 = vperm.slane %v1290, 0
        %v1303 = vperm.slane %v1291, 0
        %v1304 = vperm.slane %v1292, 0
        %v1305 = vperm.slane %v1293, 0
        %v1306 = vperm.slane %v1294, 0
        %v1317 = vunpack.c.l.b16 %v1264
        %v1318 = vunpack.c.l.b16 %v1265
        %v1319 = vunpack.c.l.b16 %v1266
        %v1320 = vunpack.c.l.b16 %v1267
        %v1321 = vpack.c.b16 %v1318, %v1317
        %v1322 = vpack.c.b16 %v1320, %v1319
        %v1326 = vsel %vm680, %v1262, 0
        %1328 = vmatpush.bf16.msra.mxu0 0
        %1329 = vmatpush.bf16.msra.mxu0 0
        %1330 = vmatpush.bf16.msra.mxu0 0
        %1331 = vmatpush.bf16.msra.mxu0 0
        %1332 = vmatpush.bf16.msra.mxu0 0
        %1333 = vmatpush.bf16.msra.mxu0 0
        %1334 = vmatpush.bf16.msra.mxu0 %v1322
        %1335 = vmatpush.bf16.msra.mxu0 %v1321
        %1336 = vmatmul.bf16.gmra.mxu0 %v1326
        %v1337 = vpop.f32.mrf.mxu0
        %v1338 = vadd.f32 %v1301, %v1337
        %v1339 = vpop.f32.mrf.mxu0
        %1340 = vdwg.mxu0
        %v1345 = vunpack.c.l.b16 %v1268
        %v1346 = vunpack.c.l.b16 %v1269
        %v1347 = vunpack.c.l.b16 %v1270
        %v1348 = vunpack.c.l.b16 %v1271
        %v1349 = vpack.c.b16 %v1346, %v1345
        %v1350 = vpack.c.b16 %v1348, %v1347
        %1353 = vmatpush.bf16.msra.mxu0 0
        %1354 = vmatpush.bf16.msra.mxu0 0
        %1355 = vmatpush.bf16.msra.mxu0 0
        %1356 = vmatpush.bf16.msra.mxu0 0
        %1357 = vmatpush.bf16.msra.mxu0 0
        %1358 = vmatpush.bf16.msra.mxu0 0
        %1359 = vmatpush.bf16.msra.mxu0 %v1350
        %1360 = vmatpush.bf16.msra.mxu0 %v1349
        %1361 = vmatmul.bf16.gmra.mxu0 %v1326
        %v1362 = vpop.f32.mrf.mxu0
        %v1363 = vadd.f32 %v1302, %v1362
        %v1364 = vpop.f32.mrf.mxu0
        %1365 = vdwg.mxu0
        %v1370 = vunpack.c.l.b16 %v1272
        %v1371 = vunpack.c.l.b16 %v1273
        %v1372 = vunpack.c.l.b16 %v1274
        %v1373 = vunpack.c.l.b16 %v1275
        %v1374 = vpack.c.b16 %v1371, %v1370
        %v1375 = vpack.c.b16 %v1373, %v1372
        %1378 = vmatpush.bf16.msra.mxu0 0
        %1379 = vmatpush.bf16.msra.mxu0 0
        %1380 = vmatpush.bf16.msra.mxu0 0
        %1381 = vmatpush.bf16.msra.mxu0 0
        %1382 = vmatpush.bf16.msra.mxu0 0
        %1383 = vmatpush.bf16.msra.mxu0 0
        %1384 = vmatpush.bf16.msra.mxu0 %v1375
        %1385 = vmatpush.bf16.msra.mxu0 %v1374
        %1386 = vmatmul.bf16.gmra.mxu0 %v1326
        %v1387 = vpop.f32.mrf.mxu0
        %v1388 = vadd.f32 %v1303, %v1387
        %v1389 = vpop.f32.mrf.mxu0
        %1390 = vdwg.mxu0
        %v1395 = vunpack.c.l.b16 %v1276
        %v1396 = vunpack.c.l.b16 %v1277
        %v1397 = vunpack.c.l.b16 %v1278
        %v1398 = vunpack.c.l.b16 %v1279
        %v1399 = vpack.c.b16 %v1396, %v1395
        %v1400 = vpack.c.b16 %v1398, %v1397
        %1403 = vmatpush.bf16.msra.mxu0 0
        %1404 = vmatpush.bf16.msra.mxu0 0
        %1405 = vmatpush.bf16.msra.mxu0 0
        %1406 = vmatpush.bf16.msra.mxu0 0
        %1407 = vmatpush.bf16.msra.mxu0 0
        %1408 = vmatpush.bf16.msra.mxu0 0
        %1409 = vmatpush.bf16.msra.mxu0 %v1400
        %1410 = vmatpush.bf16.msra.mxu0 %v1399
        %1411 = vmatmul.bf16.gmra.mxu0 %v1326
        %v1412 = vpop.f32.mrf.mxu0
        %v1413 = vadd.f32 %v1304, %v1412
        %v1414 = vpop.f32.mrf.mxu0
        %1415 = vdwg.mxu0
        %v1420 = vunpack.c.l.b16 %v1280
        %v1421 = vunpack.c.l.b16 %v1281
        %v1422 = vunpack.c.l.b16 %v1282
        %v1423 = vunpack.c.l.b16 %v1283
        %v1424 = vpack.c.b16 %v1421, %v1420
        %v1425 = vpack.c.b16 %v1423, %v1422
        %1428 = vmatpush.bf16.msra.mxu0 0
        %1429 = vmatpush.bf16.msra.mxu0 0
        %1430 = vmatpush.bf16.msra.mxu0 0
        %1431 = vmatpush.bf16.msra.mxu0 0
        %1432 = vmatpush.bf16.msra.mxu0 0
        %1433 = vmatpush.bf16.msra.mxu0 0
        %1434 = vmatpush.bf16.msra.mxu0 %v1425
        %1435 = vmatpush.bf16.msra.mxu0 %v1424
        %1436 = vmatmul.bf16.gmra.mxu0 %v1326
        %v1437 = vpop.f32.mrf.mxu0
        %v1438 = vadd.f32 %v1305, %v1437
        %v1439 = vpop.f32.mrf.mxu0
        %1440 = vdwg.mxu0
        %v1445 = vunpack.c.l.b16 %v1284
        %v1446 = vunpack.c.l.b16 %v1285
        %v1447 = vunpack.c.l.b16 %v1286
        %v1448 = vunpack.c.l.b16 %v1287
        %v1449 = vpack.c.b16 %v1446, %v1445
        %v1450 = vpack.c.b16 %v1448, %v1447
        %1453 = vmatpush.bf16.msra.mxu0 0
        %1454 = vmatpush.bf16.msra.mxu0 0
        %1455 = vmatpush.bf16.msra.mxu0 0
        %1456 = vmatpush.bf16.msra.mxu0 0
        %1457 = vmatpush.bf16.msra.mxu0 0
        %1458 = vmatpush.bf16.msra.mxu0 0
        %1459 = vmatpush.bf16.msra.mxu0 %v1450
        %1460 = vmatpush.bf16.msra.mxu0 %v1449
        %1461 = vmatmul.bf16.gmra.mxu0 %v1326
        %v1462 = vpop.f32.mrf.mxu0
        %v1463 = vadd.f32 %v1306, %v1462
        %v1464 = vpop.f32.mrf.mxu0
        %1465 = vdwg.mxu0
        %v1466 = vpack.c.bf16 %v1338, %v1338
        %v1467 = vpack.c.bf16 %v1363, %v1363
        %v1468 = vpack.c.bf16 %v1388, %v1388
        %v1469 = vpack.c.bf16 %v1413, %v1413
        %v1471 = vsel %vm924, %v1466, 0
        %v1474 = vsel %vm924, %v1468, 0
        %1476 = vmatpush.bf16.xpose.msra.mxu0 0
        %1477 = vmatpush.bf16.xpose.msra.mxu0 0
        %1478 = vmatpush.bf16.xpose.msra.mxu0 0
        %1479 = vmatpush.bf16.xpose.msra.mxu0 0
        %1480 = vmatpush.bf16.xpose.msra.mxu0 0
        %1481 = vmatpush.bf16.xpose.msra.mxu0 0
        %1482 = vmatpush.bf16.xpose.msra.mxu0 0
        %1483 = vmatpush.bf16.xpose.msra.mxu0 %v1474
        %1484 = vmatmul.bf16.gmra.mxu0 %v1471
        %v1485 = vpop.f32.mrf.mxu0
        %v1486 = vadd.f32 0.0, %v1485
        %v1487 = vpop.f32.mrf.mxu0
        %1488 = vdwg.mxu0
        %v1490 = vsel %vm924, %v1467, 0
        %v1493 = vsel %vm924, %v1469, 0
        %1495 = vmatpush.bf16.xpose.msra.mxu0 0
        %1496 = vmatpush.bf16.xpose.msra.mxu0 0
        %1497 = vmatpush.bf16.xpose.msra.mxu0 0
        %1498 = vmatpush.bf16.xpose.msra.mxu0 0
        %1499 = vmatpush.bf16.xpose.msra.mxu0 0
        %1500 = vmatpush.bf16.xpose.msra.mxu0 0
        %1501 = vmatpush.bf16.xpose.msra.mxu0 0
        %1502 = vmatpush.bf16.xpose.msra.mxu0 %v1493
        %1503 = vmatmul.bf16.gmra.mxu0 %v1490
        %v1504 = vpop.f32.mrf.mxu0
        %v1505 = vadd.f32 0.0, %v1504
        %v1506 = vpop.f32.mrf.mxu0
        %1507 = vdwg.mxu0
        %v1508 = vmul.f32 %v1486, 0.25
        %v1509 = vmul.f32 %v1505, 0.25
        %v1510 = vadd.f32 %v1508, %v966
        %v1511 = vadd.f32 %v1509, %v966
        %v1512 = vsel %vm970, %v1510, -inf
        %1513 = vmax.xlane.f32.xlu0 %v1512
        %v1514 = vpop.xlane.xlu0 %1513
        %v1515 = vsel %vm970, %v1511, -inf
        %1516 = vmax.xlane.f32.xlu0 %v1515
        %v1517 = vpop.xlane.xlu0 %1516
        %v1518 = vsub.f32 %v1510, %v1514
        %v1519 = vsub.f32 %v1511, %v1517
        %v1520 = vmul.f32 %v1518, 1.442695
        %v1521 = vpow.pop %v1520
        %v1522 = vmul.f32 %v1519, 1.442695
        %v1523 = vpow.pop %v1522
        %v1524 = vsel %vm970, %v1521, 0.0
        %1525 = vadd.xlane.f32.xlu0 %v1524
        %v1526 = vpop.xlane.xlu0 %1525
        %v1527 = vsel %vm970, %v1523, 0.0
        %1528 = vadd.xlane.f32.xlu0 %v1527
        %v1529 = vpop.xlane.xlu0 %1528
        %v1530 = vrcp.pop %v1526
        %v1531 = vrcp.pop %v1529
        %v1532 = vmul.f32 %v1521, %v1530
        %v1533 = vmul.f32 %v1523, %v1531
        %v1534 = vpack.c.bf16 %v1532, %v1532
        %v1535 = vpack.c.bf16 %v1533, %v1533
        %v1536 = vpack.c.bf16 %v1438, %v1438
        %v1537 = vpack.c.bf16 %v1463, %v1463
        %v1539 = vsel %vm970, %v1534, 0
        %v1542 = vsel %vm1000, %v1536, 0
        %1544 = vmatpush.bf16.msra.mxu0 0
        %1545 = vmatpush.bf16.msra.mxu0 0
        %1546 = vmatpush.bf16.msra.mxu0 0
        %1547 = vmatpush.bf16.msra.mxu0 0
        %1548 = vmatpush.bf16.msra.mxu0 0
        %1549 = vmatpush.bf16.msra.mxu0 0
        %1550 = vmatpush.bf16.msra.mxu0 0
        %1551 = vmatpush.bf16.msra.mxu0 %v1542
        %1552 = vmatmul.bf16.gmra.mxu0 %v1539
        %v1553 = vpop.f32.mrf.mxu0
        %v1554 = vadd.f32 0.0, %v1553
        %v1555 = vpop.f32.mrf.mxu0
        %1556 = vdwg.mxu0
        %v1558 = vsel %vm970, %v1535, 0
        %v1561 = vsel %vm1000, %v1537, 0
        %1563 = vmatpush.bf16.msra.mxu0 0
        %1564 = vmatpush.bf16.msra.mxu0 0
        %1565 = vmatpush.bf16.msra.mxu0 0
        %1566 = vmatpush.bf16.msra.mxu0 0
        %1567 = vmatpush.bf16.msra.mxu0 0
        %1568 = vmatpush.bf16.msra.mxu0 0
        %1569 = vmatpush.bf16.msra.mxu0 0
        %1570 = vmatpush.bf16.msra.mxu0 %v1561
        %1571 = vmatmul.bf16.gmra.mxu0 %v1558
        %v1572 = vpop.f32.mrf.mxu0
        %v1573 = vadd.f32 0.0, %v1572
        %v1574 = vpop.f32.mrf.mxu0
        %1575 = vdwg.mxu0
        %v1576 = vpack.c.bf16 %v1554, %v1554
        %v1577 = vpack.c.bf16 %v1573, %v1573
        %s1578 = scalar_lea.vmem %s6, 16
        %v1579 = vld [vmem:[%s1578] sm:$0xf]
        %v1580 = vld [vmem:[%s1578 + $0x4] sm:$0xf]
        %v1581 = vld [vmem:[%s1578 + $0x8] sm:$0xf]
        %v1582 = vld [vmem:[%s1578 + $0xc] sm:$0xf]
        %v1585 = vunpack.c.l.b16 %v1579
        %v1586 = vunpack.c.l.b16 %v1580
        %v1587 = vpack.c.b16 %v1586, %v1585
        %v1590 = vsel %vm924, %v1576, 0
        %1592 = vmatpush.bf16.msra.mxu0 0
        %1593 = vmatpush.bf16.msra.mxu0 0
        %1594 = vmatpush.bf16.msra.mxu0 0
        %1595 = vmatpush.bf16.msra.mxu0 0
        %1596 = vmatpush.bf16.msra.mxu0 0
        %1597 = vmatpush.bf16.msra.mxu0 0
        %1598 = vmatpush.bf16.msra.mxu0 0
        %1599 = vmatpush.bf16.msra.mxu0 %v1587
        %1600 = vmatmul.bf16.gmra.mxu0 %v1590
        %v1601 = vpop.f32.mrf.mxu0
        %v1602 = vadd.f32 0.0, %v1601
        %v1603 = vpop.f32.mrf.mxu0
        %1604 = vdwg.mxu0
        %v1607 = vunpack.c.l.b16 %v1581
        %v1608 = vunpack.c.l.b16 %v1582
        %v1609 = vpack.c.b16 %v1608, %v1607
        %v1612 = vsel %vm924, %v1577, 0
        %1614 = vmatpush.bf16.msra.mxu0 0
        %1615 = vmatpush.bf16.msra.mxu0 0
        %1616 = vmatpush.bf16.msra.mxu0 0
        %1617 = vmatpush.bf16.msra.mxu0 0
        %1618 = vmatpush.bf16.msra.mxu0 0
        %1619 = vmatpush.bf16.msra.mxu0 0
        %1620 = vmatpush.bf16.msra.mxu0 0
        %1621 = vmatpush.bf16.msra.mxu0 %v1609
        %1622 = vmatmul.bf16.gmra.mxu0 %v1612
        %v1623 = vpop.f32.mrf.mxu0
        %v1624 = vadd.f32 0.0, %v1623
        %v1625 = vpop.f32.mrf.mxu0
        %1626 = vdwg.mxu0
        %v1627 = vsel %vm680, %v1602, 0.0
        %v1628 = vsel %vm680, %v1624, 0.0
        %v1629 = vadd.f32 %v1627, %v1628
        %s1630 = scalar_lea.vmem %s7, 1
        %v1631 = vld [vmem:[%s1630] sm:$0x1]
        %v1633 = vperm.slane %v1631, 0
        %v1635 = vadd.f32 %v1629, %v1633
        %v1636 = vunpack.c.l.bf16 %v1262
        %v1637 = vadd.f32 %v1635, %v1636
        %s1638 = scalar_lea.vmem %s8, 1
        %v1639 = vld [vmem:[%s1638] sm:$0x1]
        %s1640 = scalar_lea.vmem %s9, 1
        %v1641 = vld [vmem:[%s1640] sm:$0x1]
        %v1642 = vsel %vm680, %v1637, 0.0
        %1643 = vadd.xlane.f32.xlu0 %v1642
        %v1644 = vpop.xlane.xlu0 %1643
        %v1645 = vmul.f32 %v1644, %v690
        %v1646 = vsub.f32 %v1637, %v1645
        %v1647 = vmul.f32 %v1646, %v1646
        %v1648 = vsel %vm680, %v1647, 0.0
        %1649 = vadd.xlane.f32.xlu0 %v1648
        %v1650 = vpop.xlane.xlu0 %1649
        %v1651 = vmul.f32 %v1650, %v690
        %v1652 = vadd.f32 %v1651, 1e-05
        %v1653 = vrsqrt.pop %v1652
        %v1654 = vmul.f32 %v1653, %v1652
        %v1655 = vmul.f32 %v1654, %v1653
        %v1656 = vmul.f32 0.5, %v1655
        %v1657 = vsub.f32 1.5, %v1656
        %v1658 = vmul.f32 %v1653, %v1657
        %vm1659 = vweird.f32 %v1652
        %vm1660 = vweird.f32 %v1653
        %vm1661 = vmor %vm1659, %vm1660
        %v1662 = vsel %vm1661, %v1653, %v1658
        %v1663 = vmul.f32 %v1646, %v1662
        %v1665 = vperm.slane %v1639, 0
        %v1667 = vmul.f32 %v1663, %v1665
        %v1669 = vperm.slane %v1641, 0
        %v1671 = vadd.f32 %v1667, %v1669
        %v1672 = vpack.c.bf16 %v1671, %v1671
        %s1673 = scalar_lea.vmem %s10, 16
        %v1674 = vld [vmem:[%s1673] sm:$0xf]
        %v1675 = vld [vmem:[%s1673 + $0x4] sm:$0xf]
        %v1676 = vld [vmem:[%s1673 + $0x8] sm:$0xf]
        %v1677 = vld [vmem:[%s1673 + $0xc] sm:$0xf]
        %s1678 = scalar_lea.vmem %s11, 1
        %v1679 = vld [vmem:[%s1678] sm:$0x1]
        %v1681 = vperm.slane %v1679, 0
        %v1687 = vunpack.c.l.b16 %v1674
        %v1688 = vunpack.c.l.b16 %v1675
        %v1689 = vunpack.c.l.b16 %v1676
        %v1690 = vunpack.c.l.b16 %v1677
        %v1691 = vpack.c.b16 %v1688, %v1687
        %v1692 = vpack.c.b16 %v1690, %v1689
        %v1696 = vsel %vm680, %v1672, 0
        %1698 = vmatpush.bf16.msra.mxu0 0
        %1699 = vmatpush.bf16.msra.mxu0 0
        %1700 = vmatpush.bf16.msra.mxu0 0
        %1701 = vmatpush.bf16.msra.mxu0 0
        %1702 = vmatpush.bf16.msra.mxu0 0
        %1703 = vmatpush.bf16.msra.mxu0 0
        %1704 = vmatpush.bf16.msra.mxu0 %v1692
        %1705 = vmatpush.bf16.msra.mxu0 %v1691
        %1706 = vmatmul.bf16.gmra.mxu0 %v1696
        %v1707 = vpop.f32.mrf.mxu0
        %v1708 = vadd.f32 %v1681, %v1707
        %v1709 = vpop.f32.mrf.mxu0
        %1710 = vdwg.mxu0
        %v1711 = vmul.f32 %v1708, %v1708
        %v1712 = vmul.f32 %v1708, %v1711
        %v1713 = vmul.f32 %v1712, 0.044715
        %v1714 = vadd.f32 %v1708, %v1713
        %v1715 = vmul.f32 %v1714, 0.7978846
        %v1716 = vtanh.pop %v1715
        %v1717 = vadd.f32 %v1716, 1.0
        %v1718 = vmul.f32 %v1717, 0.5
        %v1719 = vmul.f32 %v1708, %v1718
        %v1720 = vpack.c.bf16 %v1719, %v1719
        %s1721 = scalar_lea.vmem %s12, 32
        %v1722 = vld [vmem:[%s1721] sm:$0xf]
        %v1723 = vld [vmem:[%s1721 + $0x4] sm:$0xf]
        %v1724 = vld [vmem:[%s1721 + $0x8] sm:$0xf]
        %v1725 = vld [vmem:[%s1721 + $0xc] sm:$0xf]
        %v1726 = vld [vmem:[%s1721 + $0x10] sm:$0xf]
        %v1727 = vld [vmem:[%s1721 + $0x14] sm:$0xf]
        %v1728 = vld [vmem:[%s1721 + $0x18] sm:$0xf]
        %v1729 = vld [vmem:[%s1721 + $0x1c] sm:$0xf]
        %s1730 = scalar_lea.vmem %s13, 1
        %v1731 = vld [vmem:[%s1730] sm:$0x1]
        %v1733 = vperm.slane %v1731, 0
        %v1743 = vunpack.c.l.b16 %v1722
        %v1744 = vunpack.c.l.b16 %v1723
        %v1745 = vunpack.c.l.b16 %v1724
        %v1746 = vunpack.c.l.b16 %v1725
        %v1747 = vunpack.c.l.b16 %v1726
        %v1748 = vunpack.c.l.b16 %v1727
        %v1749 = vunpack.c.l.b16 %v1728
        %v1750 = vunpack.c.l.b16 %v1729
        %v1751 = vpack.c.b16 %v1744, %v1743
        %v1752 = vpack.c.b16 %v1746, %v1745
        %v1753 = vpack.c.b16 %v1748, %v1747
        %v1754 = vpack.c.b16 %v1750, %v1749
        %v1760 = vsel %vm1211, %v1720, 0
        %1762 = vmatpush.bf16.msra.mxu0 0
        %1763 = vmatpush.bf16.msra.mxu0 0
        %1764 = vmatpush.bf16.msra.mxu0 0
        %1765 = vmatpush.bf16.msra.mxu0 0
        %1766 = vmatpush.bf16.msra.mxu0 %v1754
        %1767 = vmatpush.bf16.msra.mxu0 %v1753
        %1768 = vmatpush.bf16.msra.mxu0 %v1752
        %1769 = vmatpush.bf16.msra.mxu0 %v1751
        %1770 = vmatmul.bf16.gmra.mxu0 %v1760
        %v1771 = vpop.f32.mrf.mxu0
        %v1772 = vadd.f32 %v1733, %v1771
        %v1773 = vpop.f32.mrf.mxu0
        %1774 = vdwg.mxu0
        %v1775 = vunpack.c.l.bf16 %v1672
        %v1776 = vadd.f32 %v1772, %v1775
        %s1777 = scalar_lea.vmem %s14, 1
        %v1778 = vld [vmem:[%s1777] sm:$0x1]
        %s1779 = scalar_lea.vmem %s15, 1
        %v1780 = vld [vmem:[%s1779] sm:$0x1]
        %v1781 = vsel %vm680, %v1776, 0.0
        %1782 = vadd.xlane.f32.xlu0 %v1781
        %v1783 = vpop.xlane.xlu0 %1782
        %v1784 = vmul.f32 %v1783, %v690
        %v1785 = vsub.f32 %v1776, %v1784
        %v1786 = vmul.f32 %v1785, %v1785
        %v1787 = vsel %vm680, %v1786, 0.0
        %1788 = vadd.xlane.f32.xlu0 %v1787
        %v1789 = vpop.xlane.xlu0 %1788
        %v1790 = vmul.f32 %v1789, %v690
        %v1791 = vadd.f32 %v1790, 1e-05
        %v1792 = vrsqrt.pop %v1791
        %v1793 = vmul.f32 %v1792, %v1791
        %v1794 = vmul.f32 %v1793, %v1792
        %v1795 = vmul.f32 0.5, %v1794
        %v1796 = vsub.f32 1.5, %v1795
        %v1797 = vmul.f32 %v1792, %v1796
        %vm1798 = vweird.f32 %v1791
        %vm1799 = vweird.f32 %v1792
        %vm1800 = vmor %vm1798, %vm1799
        %v1801 = vsel %vm1800, %v1792, %v1797
        %v1802 = vmul.f32 %v1785, %v1801
        %v1804 = vperm.slane %v1778, 0
        %v1806 = vmul.f32 %v1802, %v1804
        %v1808 = vperm.slane %v1780, 0
        %v1810 = vadd.f32 %v1806, %v1808
        %v1811 = vpack.c.bf16 %v1810, %v1810
        %v1812 = vld [vmem:[%s16] sm:$0xf]
        %v1813 = vld [vmem:[%s16 + $0x4] sm:$0xf]
        %v1814 = vld [vmem:[%s16 + $0x8] sm:$0xf]
        %v1815 = vld [vmem:[%s16 + $0xc] sm:$0xf]
        %v1816 = vld [vmem:[%s17] sm:$0x1]
        %v1821 = vunpack.c.l.b16 %v1812
        %v1822 = vunpack.c.l.b16 %v1813
        %v1823 = vunpack.c.l.b16 %v1814
        %v1824 = vunpack.c.l.b16 %v1815
        %v1825 = vpack.c.b16 %v1822, %v1821
        %v1826 = vpack.c.b16 %v1824, %v1823
        %v1830 = vsel %vm680, %v1811, 0
        %1832 = vmatpush.bf16.msra.mxu0 0
        %1833 = vmatpush.bf16.msra.mxu0 0
        %1834 = vmatpush.bf16.msra.mxu0 0
        %1835 = vmatpush.bf16.msra.mxu0 0
        %1836 = vmatpush.bf16.msra.mxu0 0
        %1837 = vmatpush.bf16.msra.mxu0 0
        %1838 = vmatpush.bf16.msra.mxu0 %v1826
        %1839 = vmatpush.bf16.msra.mxu0 %v1825
        %1840 = vmatmul.bf16.gmra.mxu0 %v1830
        %v1841 = vpop.f32.mrf.mxu0
        %v1842 = vadd.f32 %v1816, %v1841
        %v1843 = vpop.f32.mrf.mxu0
        %1844 = vdwg.mxu0
        %v1845 = vtanh.pop %v1842
        %1846 = vst [vmem:[%s661] sm:$0x1] %v1845
        %v1847 = vpack.c.bf16 %v1845, %v1845
        %v1848 = vld [vmem:[%s18] sm:$0xf]
        %v1849 = vld [vmem:[%s18 + $0x4] sm:$0xf]
        %v1850 = vld [vmem:[%s18 + $0x8] sm:$0xf]
        %v1851 = vld [vmem:[%s18 + $0xc] sm:$0xf]
        %v1852 = vld [vmem:[%s18 + $0x10] sm:$0xf]
        %v1853 = vld [vmem:[%s18 + $0x14] sm:$0xf]
        %v1854 = vld [vmem:[%s18 + $0x18] sm:$0xf]
        %v1855 = vld [vmem:[%s18 + $0x1c] sm:$0xf]
        %v1856 = vld [vmem:[%s18 + $0x20] sm:$0xf]
        %v1857 = vld [vmem:[%s18 + $0x24] sm:$0xf]
        %v1858 = vld [vmem:[%s18 + $0x28] sm:$0xf]
        %v1859 = vld [vmem:[%s18 + $0x2c] sm:$0xf]
        %v1860 = vld [vmem:[%s18 + $0x30] sm:$0xf]
        %v1861 = vld [vmem:[%s18 + $0x34] sm:$0xf]
        %v1862 = vld [vmem:[%s18 + $0x38] sm:$0xf]
        %v1863 = vld [vmem:[%s18 + $0x3c] sm:$0xf]
        %v1864 = vld [vmem:[%s19] sm:$0x1]
        %v1881 = vunpack.c.l.b16 %v1848
        %v1882 = vunpack.c.l.b16 %v1849
        %v1883 = vunpack.c.l.b16 %v1850
        %v1884 = vunpack.c.l.b16 %v1851
        %v1885 = vunpack.c.l.b16 %v1852
        %v1886 = vunpack.c.l.b16 %v1853
        %v1887 = vunpack.c.l.b16 %v1854
        %v1888 = vunpack.c.l.b16 %v1855
        %v1889 = vunpack.c.l.b16 %v1856
        %v1890 = vunpack.c.l.b16 %v1857
        %v1891 = vunpack.c.l.b16 %v1858
        %v1892 = vunpack.c.l.b16 %v1859
        %v1893 = vunpack.c.l.b16 %v1860
        %v1894 = vunpack.c.l.b16 %v1861
        %v1895 = vunpack.c.l.b16 %v1862
        %v1896 = vunpack.c.l.b16 %v1863
        %v1897 = vpack.c.b16 %v1882, %v1881
        %v1898 = vpack.c.b16 %v1884, %v1883
        %v1899 = vpack.c.b16 %v1886, %v1885
        %v1900 = vpack.c.b16 %v1888, %v1887
        %v1901 = vpack.c.b16 %v1890, %v1889
        %v1902 = vpack.c.b16 %v1892, %v1891
        %v1903 = vpack.c.b16 %v1894, %v1893
        %v1904 = vpack.c.b16 %v1896, %v1895
        %1913 = vmatpush.bf16.msra.mxu0 %v1904
        %1914 = vmatpush.bf16.msra.mxu0 %v1903
        %1915 = vmatpush.bf16.msra.mxu0 %v1902
        %1916 = vmatpush.bf16.msra.mxu0 %v1901
        %1917 = vmatpush.bf16.msra.mxu0 %v1900
        %1918 = vmatpush.bf16.msra.mxu0 %v1899
        %1919 = vmatpush.bf16.msra.mxu0 %v1898
        %1920 = vmatpush.bf16.msra.mxu0 %v1897
        %1921 = vmatmul.bf16.gmra.mxu0 %v1847
        %v1922 = vpop.f32.mrf.mxu0
        %v1923 = vadd.f32 %v1864, %v1922
        %v1924 = vpop.f32.mrf.mxu0
        %1925 = vdwg.mxu0
        %1926 = vst [vmem:[%s667] sm:$0x1] %v1923
        %s1927 = sand.u32 %s477, 1
        %s1928 = scalar_lea.sflag [#allocation3], %s1927
        %s1929 = sand.u32 %s477, 1
        %s1930 = scalar_lea.vmem [#allocation2], %s1929
        %s1931 = sand.u32 %s503, 1
        %s1932 = scalar_lea.sflag [#allocation5], %s1931
        %s1933 = sand.u32 %s503, 1
        %s1934 = scalar_lea.vmem [#allocation4], %s1933
        // Predicated region
        $region101: #{roberta_multilabel_forward.1} parent=99 // pred_check
          %p1935 = pneg %p487
        $region102: #{roberta_multilabel_forward.1} parent=99 // pred_check_branch
          %1937 = sbr.rel (%p1935) target = $region104
        $region103: #{roberta_multilabel_forward.1} parent=99 // pred_region
          %1939 = vsyncadd %s1928, 0
          %s1940 = scalar_lea.hbm %s20, %s39
          %s1942 = sshll.u32 %s1930, 4
          %s1943 = int_to_ptr.vmem [resolvable:$true] %s1942
          %s1944 = sshll.u32 %s1940, 4
          %s1945 = int_to_ptr.hbm [resolvable:$true] %s1944
          %1947 = dma.vmem_to_hbm [thread:$0]  %s1943, 16, %s1945, %s1928
        $region104: #{roberta_multilabel_forward.1} parent=99 // pred_fallthru
          _
        // Predicated region
        $region105: #{roberta_multilabel_forward.1} parent=99 // pred_check
          %p1948 = pneg %p513
        $region106: #{roberta_multilabel_forward.1} parent=99 // pred_check_branch
          %1950 = sbr.rel (%p1948) target = $region108
        $region107: #{roberta_multilabel_forward.1} parent=99 // pred_region
          %1952 = vsyncadd %s1932, 0
          %s1953 = scalar_lea.hbm %s21, %s39
          %s1955 = sshll.u32 %s1934, 4
          %s1956 = int_to_ptr.vmem [resolvable:$true] %s1955
          %s1957 = sshll.u32 %s1953, 4
          %s1958 = int_to_ptr.hbm [resolvable:$true] %s1957
          %1960 = dma.vmem_to_hbm [thread:$0]  %s1956, 16, %s1958, %s1932
        $region108: #{roberta_multilabel_forward.1} parent=99 // pred_fallthru
          _
      $region100: #{roberta_multilabel_forward.1} parent=5 // pred_fallthru
        _
      %p1961 = scmp.le.s32.totalorder 2, %s34
      // Predicated region
      $region109: #{roberta_multilabel_forward.1} parent=5 // pred_check
        %p1962 = pneg %p1961
      $region110: #{roberta_multilabel_forward.1} parent=5 // pred_check_branch
        %1964 = sbr.rel (%p1962) target = $region112
      $region111: #{roberta_multilabel_forward.1} parent=5 // pred_region
        %s1965 = ssub.s32 %s34, 2
        // Predicated region
        $region113: #{roberta_multilabel_forward.1} parent=111 // pred_check
          %p1966 = pneg %p493
        $region114: #{roberta_multilabel_forward.1} parent=111 // pred_check_branch
          %1968 = sbr.rel (%p1966) target = $region116
        $region115: #{roberta_multilabel_forward.1} parent=111 // pred_region
          %s1969 = sand.u32 %s478, 1
          %s1970 = scalar_lea.sflag [#allocation3], %s1969
          %s1971 = sand.u32 %s478, 1
          %s1972 = scalar_lea.vmem [#allocation2], %s1971
          %1974 = dma.done %s1970, 16
        $region116: #{roberta_multilabel_forward.1} parent=111 // pred_fallthru
          _
        // Predicated region
        $region117: #{roberta_multilabel_forward.1} parent=111 // pred_check
          %p1975 = pneg %p519
        $region118: #{roberta_multilabel_forward.1} parent=111 // pred_check_branch
          %1977 = sbr.rel (%p1975) target = $region120
        $region119: #{roberta_multilabel_forward.1} parent=111 // pred_region
          %s1978 = sand.u32 %s504, 1
          %s1979 = scalar_lea.sflag [#allocation5], %s1978
          %s1980 = sand.u32 %s504, 1
          %s1981 = scalar_lea.vmem [#allocation4], %s1980
          %1983 = dma.done %s1979, 16
        $region120: #{roberta_multilabel_forward.1} parent=111 // pred_fallthru
          _
      $region112: #{roberta_multilabel_forward.1} parent=5 // pred_fallthru
        _
    $region6: #{roberta_multilabel_forward.1} parent=1 // loop_footer
      %s38 = sadd.s32 1, %s34
    $region7: #{roberta_multilabel_forward.1} parent=1 // loop_footer_branch
      %33 = sbr.rel target = $region3
    $region8: #{roberta_multilabel_forward.1} parent=1 // loop_exit
      _
    %1984 = vsyncpa [#allocation3], 1
    %s1985 = scalar_lea.sflag [#allocation3], 1
    %1986 = vsyncpa %s1985, 1
    %1987 = vsyncpa [#allocation5], 1
    %s1988 = scalar_lea.sflag [#allocation5], 1
    %1989 = vsyncpa %s1988, 1

</llo_original>
